<compile_context>
chip_gen: v7x
topology: tpu7x:2x2x1
jax: 0.10.0
libtpu: 0.0.40
codegen_flags: <defaults>
</compile_context>

<pallas_src>
import numpy as np
import jax
import jax.numpy as jnp
from jax.experimental import pallas as pl
from jax.experimental.pallas import tpu as pltpu

# ---------------- configuration (matches WaveNet.__init__ arguments) ----------
BLOCKS = 2          # blocks
LAYERS = 2          # layers per block
IN_CH = 4           # in_channel
OUT_CH = 6          # out_channel (classes)
RES_CH = 8          # residual_channels
SKIP_CH = 12        # skip_channels
COND_CH = 5         # cond_channels
KERNEL_SIZE = 2     # kernel_size (two taps of a K=2 causal conv)
CAUSAL_INPUT = True # the default (False) path errors in torch due to length mismatch

B = 2
L = 16
COND_L = 4
BL = B * L

NUM_LAYERS = BLOCKS * LAYERS
DILATIONS = [2 ** i for _ in range(BLOCKS) for i in range(LAYERS)]   # [1,2,1,2]

ZW = 2 * RES_CH                       # fused gate|output width (16)
RSW = RES_CH + SKIP_CH                # fused residual|skip width (20)
COND_W = NUM_LAYERS * ZW + SKIP_CH    # fused conditioning width (76)

HEAD_K = 2 * IN_CH + COND_CH + 1      # [x(t-2) | x(t-1) | c | 1]  -> 14
HEAD_N = RES_CH + COND_W              # [first_conv out | cond_all] -> 84

LANE_W = 128                          # weight-slab / output lane width


def _r8(n):
    return ((n + 7) // 8) * 8


# ------------- weight-slab row layout (all weights in one (rows,128) slab) ----
HEAD_ROWS = _r8(HEAD_K)               # 16
WSK_ROWS = _r8(RES_CH)                # 8
WZ_BLOCK = _r8(2 * RES_CH)            # 16 rows per layer (fused [wz0; wz1])
WRS_BLOCK = _r8(RES_CH)               # 8 rows per layer (fused [wr | wsl])
WFC_ROWS = _r8(SKIP_CH)               # 16
WLG_ROWS = _r8(SKIP_CH)               # 16
BIAS_BLOCK = _r8(2 + NUM_LAYERS)      # 8 (bsk, per-layer [br|bsl], blg)

ROW_HEAD = 0
ROW_WSK = ROW_HEAD + HEAD_ROWS
ROW_WZ = ROW_WSK + WSK_ROWS
ROW_WRS = ROW_WZ + NUM_LAYERS * WZ_BLOCK
ROW_WFC = ROW_WRS + NUM_LAYERS * WRS_BLOCK
ROW_WLG = ROW_WFC + WFC_ROWS
ROW_BSK = ROW_WLG + WLG_ROWS
ROW_BRS0 = ROW_BSK + 1
ROW_BLG = ROW_BRS0 + NUM_LAYERS
SLAB_ROWS = ROW_BSK + BIAS_BLOCK      # 160


# ------------------------------- Pallas kernel --------------------------------
def wavenet_kernel(xin_ref, w_ref, o_ref):
    mm = lambda a, b: jnp.dot(a, b, preferred_element_type=jnp.float32)

    bl = xin_ref.shape[0]
    # position of each row inside its batch segment (batch folded into sublanes)
    row = jax.lax.broadcasted_iota(jnp.int32, (bl, 1), 0) % L
    # hoisted causal masks (dilations only take values in {1, 2} here)
    masks = {d: row >= d for d in sorted(set(DILATIONS))}

    def causal_shift(v, d):
        # out[t] = v[t-d] within each batch segment, zeros for the first d rows.
        # pltpu.roll handles the shift on the XLU; masking rows with
        # (row % L) < d implements both the causal zero padding and prevents
        # roll leakage across the batch boundary / the wrap-around.
        return jnp.where(masks[d], pltpu.roll(v, d, axis=0), 0.0)

    # Fused head matmul: [x(t-2) | x(t-1) | c | 1] @ blockdiag(first_conv, cond)
    #   -> lanes [0:RES_CH)          = first_conv output (bias included)
    #   -> lanes [RES_CH:HEAD_N)     = all conditioning projections, with the
    #      per-layer gate/out (+cond) biases and the fc+top-cond bias pre-added
    head = mm(xin_ref[...], w_ref[ROW_HEAD:ROW_HEAD + HEAD_K, :HEAD_N])
    res = head[:, :RES_CH]
    cond_all = head[:, RES_CH:HEAD_N]

    # skip_conv (1x1)
    skip = (mm(res, w_ref[ROW_WSK:ROW_WSK + RES_CH, :SKIP_CH])
            + w_ref[ROW_BSK:ROW_BSK + 1, :SKIP_CH])

    # WaveNetLayer stack (static unroll; per-layer dilation is static)
    for l, d in enumerate(DILATIONS):
        res_sh = causal_shift(res, d)
        # single fused matmul for both conv taps and both gate|out halves
        z_in = jnp.concatenate([res_sh, res], axis=-1)               # (BL, 2*RES)
        wz = w_ref[ROW_WZ + l * WZ_BLOCK:ROW_WZ + l * WZ_BLOCK + 2 * RES_CH, :ZW]
        z = mm(z_in, wz) + cond_all[:, l * ZW:(l + 1) * ZW]          # biases in cond_all
        h = jax.nn.sigmoid(z[:, :RES_CH]) * jnp.tanh(z[:, RES_CH:ZW])
        wrs = w_ref[ROW_WRS + l * WRS_BLOCK:ROW_WRS + l * WRS_BLOCK + RES_CH, :RSW]
        rs = mm(h, wrs) + w_ref[ROW_BRS0 + l:ROW_BRS0 + l + 1, :RSW]
        res = res + rs[:, :RES_CH]
        skip = skip + rs[:, RES_CH:RSW]

    skip = jnp.maximum(skip, 0.0)
    # fc + top-level conditioning (fc bias + top cond bias already in cond_all)
    skip = (mm(skip, w_ref[ROW_WFC:ROW_WFC + SKIP_CH, :SKIP_CH])
            + cond_all[:, NUM_LAYERS * ZW:NUM_LAYERS * ZW + SKIP_CH])
    skip = jnp.maximum(skip, 0.0)
    # lane-dense logits: wlg/blg are zero-padded to 128 lanes host-side
    o_ref[...] = (mm(skip, w_ref[ROW_WLG:ROW_WLG + SKIP_CH, :])
                  + w_ref[ROW_BLG:ROW_BLG + 1, :])


# ------------------------------- glue / wrapper --------------------------------
def _upsample_cond(length, c_ncl):
    # mirrors WaveNet._upsample_cond exactly
    if c_ncl.shape[2] != 1:
        reps = length // c_ncl.shape[2] + 1
        c_ncl = jnp.repeat(c_ncl, reps, axis=2)[:, :, :length]
    else:
        c_ncl = jnp.broadcast_to(c_ncl, (c_ncl.shape[0], c_ncl.shape[1], length))
    return c_ncl


def pack_params(p):
    """Fuse / concatenate the PyTorch-style weights into ONE (SLAB_ROWS,128) slab."""
    NL = NUM_LAYERS

    def padc(a):
        return jnp.pad(a.astype(jnp.float32), ((0, 0), (0, LANE_W - a.shape[1])))

    # --- fused head block-diagonal weight (HEAD_K, HEAD_N) ---------------------
    wcond = jnp.concatenate(
        [jnp.concatenate([p["wcg"][l], p["wco"][l]], axis=-1) for l in range(NL)]
        + [p["wct"]], axis=-1)                                       # (COND, COND_W)
    cond_bias = jnp.concatenate(
        [jnp.concatenate([p["bg"][l] + p["bcg"][l], p["bo"][l] + p["bco"][l]], axis=-1)
         for l in range(NL)]
        + [p["bfc"] + p["bct"]], axis=-1)                            # (1, COND_W)
    head = jnp.zeros((HEAD_K, HEAD_N), jnp.float32)
    head = head.at[:IN_CH, :RES_CH].set(p["wf0"])
    head = head.at[IN_CH:2 * IN_CH, :RES_CH].set(p["wf1"])
    head = head.at[2 * IN_CH:2 * IN_CH + COND_CH, RES_CH:].set(wcond)
    head = head.at[2 * IN_CH + COND_CH:, :RES_CH].set(p["bf"])       # ones column
    head = head.at[2 * IN_CH + COND_CH:, RES_CH:].set(cond_bias)

    # --- per-layer fused weights ------------------------------------------------
    wz = [jnp.concatenate(
              [jnp.concatenate([p["w0g"][l], p["w0o"][l]], axis=-1),   # res_sh rows
               jnp.concatenate([p["w1g"][l], p["w1o"][l]], axis=-1)],  # res rows
              axis=0) for l in range(NL)]                              # (2*RES, ZW)
    wrs = [jnp.concatenate([p["wr"][l], p["wsl"][l]], axis=-1) for l in range(NL)]

    # --- remaining biases (one sublane block) -----------------------------------
    bias_rows = jnp.concatenate(
        [padc(p["bsk"])]
        + [padc(jnp.concatenate([p["br"][l], p["bsl"][l]], axis=-1)) for l in range(NL)]
        + [padc(p["blg"])], axis=0)                                   # (2+NL, 128)

    # --- assemble the slab (8-row-aligned blocks, 128 lanes) ---------------------
    rows = []

    def add_block(a, nrows):
        a = padc(a)
        rows.append(jnp.pad(a, ((0, nrows - a.shape[0]), (0, 0))))

    add_block(head, HEAD_ROWS)
    add_block(p["wsk"], WSK_ROWS)
    for l in range(NL):
        add_block(wz[l], WZ_BLOCK)
    for l in range(NL):
        add_block(wrs[l], WRS_BLOCK)
    add_block(p["wfc"], WFC_ROWS)
    add_block(p["wlg"], WLG_ROWS)                 # zero-padded to 128 output lanes
    add_block(bias_rows, BIAS_BLOCK)

    slab = jnp.concatenate(rows, axis=0)
    assert slab.shape == (SLAB_ROWS, LANE_W)
    return slab


@jax.jit
def wavenet_pallas(x_ncl, c_ncl, wslab):
    B_, _, L_ = x_ncl.shape
    x_blc = jnp.transpose(x_ncl, (0, 2, 1)).astype(jnp.float32)       # (B, L, IN)
    c_blc = jnp.transpose(_upsample_cond(L_, c_ncl), (0, 2, 1)).astype(jnp.float32)

    def shift_t(a, d):  # causal shift along time axis (zeros in front), per batch
        return jnp.pad(a, ((0, 0), (d, 0), (0, 0)))[:, :L_, :]

    x1 = shift_t(x_blc, 1)                   # WaveNet.shift_right(x)
    x2 = shift_t(x_blc, 2)                   # tap-0 input of first_conv (shifted again)
    ones = jnp.ones((B_, L_, 1), jnp.float32)
    xin = jnp.concatenate([x2, x1, c_blc, ones], axis=-1).reshape(B_ * L_, HEAD_K)

    vmem = pl.BlockSpec(memory_space=pltpu.MemorySpace.VMEM)
    out = pl.pallas_call(
        wavenet_kernel,
        out_shape=jax.ShapeDtypeStruct((B_ * L_, LANE_W), jnp.float32),
        in_specs=[vmem, vmem],
        out_specs=vmem,
    )(xin, wslab)
    out = out[:, :OUT_CH]                                             # drop lane padding
    return jnp.transpose(out.reshape(B_, L_, OUT_CH), (0, 2, 1))      # back to NCL


# ------------------------------- parameters -----------------------------------
def make_params(key):
    keys = iter(jax.random.split(key, 64))

    def w(shape, scale=0.3):
        return scale * jax.random.normal(next(keys), shape, dtype=jnp.float32)

    NL = NUM_LAYERS
    p = {}
    p["wf0"] = w((IN_CH, RES_CH)); p["wf1"] = w((IN_CH, RES_CH)); p["bf"] = w((1, RES_CH), 0.1)
    p["wsk"] = w((RES_CH, SKIP_CH)); p["bsk"] = w((1, SKIP_CH), 0.1)
    p["w0g"] = w((NL, RES_CH, RES_CH)); p["w1g"] = w((NL, RES_CH, RES_CH)); p["bg"] = w((NL, 1, RES_CH), 0.1)
    p["w0o"] = w((NL, RES_CH, RES_CH)); p["w1o"] = w((NL, RES_CH, RES_CH)); p["bo"] = w((NL, 1, RES_CH), 0.1)
    p["wcg"] = w((NL, COND_CH, RES_CH)); p["bcg"] = w((NL, 1, RES_CH), 0.1)
    p["wco"] = w((NL, COND_CH, RES_CH)); p["bco"] = w((NL, 1, RES_CH), 0.1)
    p["wr"] = w((NL, RES_CH, RES_CH)); p["br"] = w((NL, 1, RES_CH), 0.1)
    p["wsl"] = w((NL, RES_CH, SKIP_CH)); p["bsl"] = w((NL, 1, SKIP_CH), 0.1)
    p["wfc"] = w((SKIP_CH, SKIP_CH)); p["bfc"] = w((1, SKIP_CH), 0.1)
    p["wct"] = w((COND_CH, SKIP_CH)); p["bct"] = w((1, SKIP_CH), 0.1)
    p["wlg"] = w((SKIP_CH, OUT_CH)); p["blg"] = w((1, OUT_CH), 0.1)
    return p


# ------------------------ float64 numpy reference (oracle) ---------------------
def ref_forward_numpy(x_ncl, c_ncl, p):
    x = np.transpose(x_ncl, (0, 2, 1)).astype(np.float64)
    L_ = x.shape[1]
    c = c_ncl.astype(np.float64)
    if c.shape[2] != 1:
        reps = L_ // c.shape[2] + 1
        c = np.repeat(c, reps, axis=2)[:, :, :L_]
    else:
        c = np.broadcast_to(c, (c.shape[0], c.shape[1], L_))
    c = np.transpose(c, (0, 2, 1))
    p = {k: np.asarray(v, dtype=np.float64) for k, v in p.items()}

    def shift(a, d):
        out = np.zeros_like(a)
        out[:, d:, :] = a[:, :L_ - d, :]
        return out

    sig = lambda v: 1.0 / (1.0 + np.exp(-v))
    x = shift(x, 1)
    res = shift(x, 1) @ p["wf0"] + x @ p["wf1"] + p["bf"]
    skip = res @ p["wsk"] + p["bsk"]
    for l, d in enumerate(DILATIONS):
        rs = shift(res, d)
        zg = rs @ p["w0g"][l] + res @ p["w1g"][l] + p["bg"][l] + c @ p["wcg"][l] + p["bcg"][l]
        zo = rs @ p["w0o"][l] + res @ p["w1o"][l] + p["bo"][l] + c @ p["wco"][l] + p["bco"][l]
        h = sig(zg) * np.tanh(zo)
        res = res + h @ p["wr"][l] + p["br"][l]
        skip = skip + h @ p["wsl"][l] + p["bsl"][l]
    skip = np.maximum(skip, 0.0)
    skip = skip @ p["wfc"] + p["bfc"]
    skip = skip + c @ p["wct"] + p["bct"]
    skip = np.maximum(skip, 0.0)
    out = skip @ p["wlg"] + p["blg"]
    return np.transpose(out, (0, 2, 1))


# ------------------------------------ main -------------------------------------
if __name__ == "__main__":
    key = jax.random.PRNGKey(0)
    kx, kc, kp = jax.random.split(key, 3)
    x = jax.random.normal(kx, (B, IN_CH, L), dtype=jnp.float32)       # NCL, like torch
    c = jax.random.normal(kc, (B, COND_CH, COND_L), dtype=jnp.float32)
    params = make_params(kp)
    wslab = pack_params(params)

    out = wavenet_pallas(x, c, wslab)
    out = jax.block_until_ready(out)
    assert out.shape == (B, OUT_CH, L)

    ref = ref_forward_numpy(np.asarray(x), np.asarray(c), params)
    np.testing.assert_allclose(np.asarray(out), ref, rtol=5e-3, atol=5e-3)
    print("KERNEL_OK")
</pallas_src>

<mosaic_0001>
module attributes {stable_mosaic.version = 11 : i64} {
  func.func @wavenet_kernel(%arg0: memref<32x14xf32, #tpu.memory_space<vmem>>, %arg1: memref<160x128xf32, #tpu.memory_space<vmem>>, %arg2: memref<32x128xf32, #tpu.memory_space<vmem>>) attributes {dimension_semantics = [], scalar_prefetch = 0 : i64, scratch_operands = 0 : i64, tpu.core_type = #tpu.core_type<tc>} {
    %0 = tpu.iota {dimensions = array<i32: 0>} : vector<32x1xi32>
    %c16_i32 = arith.constant 16 : i32
    %c0_i32 = arith.constant 0 : i32
    %1 = arith.cmpi eq, %c16_i32, %c0_i32 : i32
    %c1_i32 = arith.constant 1 : i32
    %2 = arith.select %1, %c1_i32, %c16_i32 : i32
    %3 = vector.broadcast %2 : i32 to vector<32x1xi32>
    %4 = arith.remsi %0, %3 : vector<32x1xi32>
    %c0_i32_0 = arith.constant 0 : i32
    %5 = vector.broadcast %c0_i32_0 : i32 to vector<32x1xi32>
    %6 = arith.cmpi ne, %4, %5 : vector<32x1xi32>
    %c0_i32_1 = arith.constant 0 : i32
    %7 = vector.broadcast %c0_i32_1 : i32 to vector<32x1xi32>
    %8 = arith.cmpi slt, %4, %7 : vector<32x1xi32>
    %c0_i32_2 = arith.constant 0 : i32
    %9 = arith.cmpi slt, %2, %c0_i32_2 : i32
    %10 = vector.broadcast %9 : i1 to vector<32x1xi1>
    %11 = vector.broadcast %10 : vector<32x1xi1> to vector<32x1xi1>
    %12 = arith.xori %8, %11 : vector<32x1xi1>
    %13 = arith.andi %12, %6 : vector<32x1xi1>
    %14 = vector.broadcast %2 : i32 to vector<32x1xi32>
    %15 = arith.addi %4, %14 : vector<32x1xi32>
    %16 = arith.select %13, %15, %4 : vector<32x1xi1>, vector<32x1xi32>
    %c1_i32_3 = arith.constant 1 : i32
    %17 = vector.broadcast %c1_i32_3 : i32 to vector<32x1xi32>
    %18 = arith.cmpi sge, %16, %17 : vector<32x1xi32>
    %c2_i32 = arith.constant 2 : i32
    %19 = vector.broadcast %c2_i32 : i32 to vector<32x1xi32>
    %20 = arith.cmpi sge, %16, %19 : vector<32x1xi32>
    %c0 = arith.constant 0 : index
    %c0_4 = arith.constant 0 : index
    %21 = vector.load %arg0[%c0, %c0_4] : memref<32x14xf32, #tpu.memory_space<vmem>>, vector<32x14xf32>
    %c0_5 = arith.constant 0 : index
    %c0_6 = arith.constant 0 : index
    %22 = vector.load %arg1[%c0_5, %c0_6] : memref<160x128xf32, #tpu.memory_space<vmem>>, vector<14x84xf32>
    %cst = arith.constant dense<0.000000e+00> : vector<32x84xf32>
    %23 = tpu.matmul %21, %22, %cst {dimension_numbers = #tpu.dot_dimension_numbers<[1], [0], [0], [1], [0, 0, 1, 1], [], []>} : vector<32x14xf32>, vector<14x84xf32>, vector<32x84xf32> -> vector<32x84xf32>
    %24 = vector.extract_strided_slice %23 {offsets = [0, 0], sizes = [32, 8], strides = [1, 1]} : vector<32x84xf32> to vector<32x8xf32>
    %25 = vector.extract_strided_slice %23 {offsets = [0, 8], sizes = [32, 76], strides = [1, 1]} : vector<32x84xf32> to vector<32x76xf32>
    %c16 = arith.constant 16 : index
    %c0_7 = arith.constant 0 : index
    %26 = vector.load %arg1[%c16, %c0_7] : memref<160x128xf32, #tpu.memory_space<vmem>>, vector<8x12xf32>
    %cst_8 = arith.constant dense<0.000000e+00> : vector<32x12xf32>
    %27 = tpu.matmul %24, %26, %cst_8 {dimension_numbers = #tpu.dot_dimension_numbers<[1], [0], [0], [1], [0, 0, 1, 1], [], []>} : vector<32x8xf32>, vector<8x12xf32>, vector<32x12xf32> -> vector<32x12xf32>
    %c152 = arith.constant 152 : index
    %c0_9 = arith.constant 0 : index
    %28 = vector.load %arg1[%c152, %c0_9] : memref<160x128xf32, #tpu.memory_space<vmem>>, vector<1x12xf32>
    %29 = vector.broadcast %28 : vector<1x12xf32> to vector<32x12xf32>
    %30 = arith.addf %27, %29 : vector<32x12xf32>
    %c1_i32_10 = arith.constant 1 : i32
    %31 = tpu.dynamic_rotate %24 by %c1_i32_10 dim 0 : vector<32x8xf32>, i32 -> vector<32x8xf32>
    %cst_11 = arith.constant 0.000000e+00 : f32
    %32 = vector.shape_cast %18 : vector<32x1xi1> to vector<32x1xi1>
    %33 = vector.broadcast %32 : vector<32x1xi1> to vector<32x8xi1>
    %34 = vector.broadcast %cst_11 : f32 to vector<32x8xf32>
    %35 = arith.select %33, %31, %34 : vector<32x8xi1>, vector<32x8xf32>
    %36 = tpu.concatenate %35, %24 in 1 : vector<32x8xf32>, vector<32x8xf32> -> vector<32x16xf32>
    %c24 = arith.constant 24 : index
    %c0_12 = arith.constant 0 : index
    %37 = vector.load %arg1[%c24, %c0_12] : memref<160x128xf32, #tpu.memory_space<vmem>>, vector<16x16xf32>
    %cst_13 = arith.constant dense<0.000000e+00> : vector<32x16xf32>
    %38 = tpu.matmul %36, %37, %cst_13 {dimension_numbers = #tpu.dot_dimension_numbers<[1], [0], [0], [1], [0, 0, 1, 1], [], []>} : vector<32x16xf32>, vector<16x16xf32>, vector<32x16xf32> -> vector<32x16xf32>
    %39 = vector.extract_strided_slice %25 {offsets = [0, 0], sizes = [32, 16], strides = [1, 1]} : vector<32x76xf32> to vector<32x16xf32>
    %40 = arith.addf %38, %39 : vector<32x16xf32>
    %41 = vector.extract_strided_slice %40 {offsets = [0, 0], sizes = [32, 8], strides = [1, 1]} : vector<32x16xf32> to vector<32x8xf32>
    %42 = arith.negf %41 : vector<32x8xf32>
    %43 = math.exp %42 : vector<32x8xf32>
    %cst_14 = arith.constant 1.000000e+00 : f32
    %44 = vector.broadcast %cst_14 : f32 to vector<32x8xf32>
    %45 = arith.addf %44, %43 : vector<32x8xf32>
    %46 = arith.divf %44, %45 : vector<32x8xf32>
    %47 = vector.extract_strided_slice %40 {offsets = [0, 8], sizes = [32, 8], strides = [1, 1]} : vector<32x16xf32> to vector<32x8xf32>
    %48 = math.tanh %47 : vector<32x8xf32>
    %49 = arith.mulf %46, %48 : vector<32x8xf32>
    %c88 = arith.constant 88 : index
    %c0_15 = arith.constant 0 : index
    %50 = vector.load %arg1[%c88, %c0_15] : memref<160x128xf32, #tpu.memory_space<vmem>>, vector<8x20xf32>
    %cst_16 = arith.constant dense<0.000000e+00> : vector<32x20xf32>
    %51 = tpu.matmul %49, %50, %cst_16 {dimension_numbers = #tpu.dot_dimension_numbers<[1], [0], [0], [1], [0, 0, 1, 1], [], []>} : vector<32x8xf32>, vector<8x20xf32>, vector<32x20xf32> -> vector<32x20xf32>
    %c153 = arith.constant 153 : index
    %c0_17 = arith.constant 0 : index
    %52 = vector.load %arg1[%c153, %c0_17] : memref<160x128xf32, #tpu.memory_space<vmem>>, vector<1x20xf32>
    %53 = vector.broadcast %52 : vector<1x20xf32> to vector<32x20xf32>
    %54 = arith.addf %51, %53 : vector<32x20xf32>
    %55 = vector.extract_strided_slice %54 {offsets = [0, 0], sizes = [32, 8], strides = [1, 1]} : vector<32x20xf32> to vector<32x8xf32>
    %56 = arith.addf %24, %55 : vector<32x8xf32>
    %57 = vector.extract_strided_slice %54 {offsets = [0, 8], sizes = [32, 12], strides = [1, 1]} : vector<32x20xf32> to vector<32x12xf32>
    %58 = arith.addf %30, %57 : vector<32x12xf32>
    %c2_i32_18 = arith.constant 2 : i32
    %59 = tpu.dynamic_rotate %56 by %c2_i32_18 dim 0 : vector<32x8xf32>, i32 -> vector<32x8xf32>
    %cst_19 = arith.constant 0.000000e+00 : f32
    %60 = vector.shape_cast %20 : vector<32x1xi1> to vector<32x1xi1>
    %61 = vector.broadcast %60 : vector<32x1xi1> to vector<32x8xi1>
    %62 = vector.broadcast %cst_19 : f32 to vector<32x8xf32>
    %63 = arith.select %61, %59, %62 : vector<32x8xi1>, vector<32x8xf32>
    %64 = tpu.concatenate %63, %56 in 1 : vector<32x8xf32>, vector<32x8xf32> -> vector<32x16xf32>
    %c40 = arith.constant 40 : index
    %c0_20 = arith.constant 0 : index
    %65 = vector.load %arg1[%c40, %c0_20] : memref<160x128xf32, #tpu.memory_space<vmem>>, vector<16x16xf32>
    %cst_21 = arith.constant dense<0.000000e+00> : vector<32x16xf32>
    %66 = tpu.matmul %64, %65, %cst_21 {dimension_numbers = #tpu.dot_dimension_numbers<[1], [0], [0], [1], [0, 0, 1, 1], [], []>} : vector<32x16xf32>, vector<16x16xf32>, vector<32x16xf32> -> vector<32x16xf32>
    %67 = vector.extract_strided_slice %25 {offsets = [0, 16], sizes = [32, 16], strides = [1, 1]} : vector<32x76xf32> to vector<32x16xf32>
    %68 = arith.addf %66, %67 : vector<32x16xf32>
    %69 = vector.extract_strided_slice %68 {offsets = [0, 0], sizes = [32, 8], strides = [1, 1]} : vector<32x16xf32> to vector<32x8xf32>
    %70 = arith.negf %69 : vector<32x8xf32>
    %71 = math.exp %70 : vector<32x8xf32>
    %cst_22 = arith.constant 1.000000e+00 : f32
    %72 = vector.broadcast %cst_22 : f32 to vector<32x8xf32>
    %73 = arith.addf %72, %71 : vector<32x8xf32>
    %74 = arith.divf %72, %73 : vector<32x8xf32>
    %75 = vector.extract_strided_slice %68 {offsets = [0, 8], sizes = [32, 8], strides = [1, 1]} : vector<32x16xf32> to vector<32x8xf32>
    %76 = math.tanh %75 : vector<32x8xf32>
    %77 = arith.mulf %74, %76 : vector<32x8xf32>
    %c96 = arith.constant 96 : index
    %c0_23 = arith.constant 0 : index
    %78 = vector.load %arg1[%c96, %c0_23] : memref<160x128xf32, #tpu.memory_space<vmem>>, vector<8x20xf32>
    %cst_24 = arith.constant dense<0.000000e+00> : vector<32x20xf32>
    %79 = tpu.matmul %77, %78, %cst_24 {dimension_numbers = #tpu.dot_dimension_numbers<[1], [0], [0], [1], [0, 0, 1, 1], [], []>} : vector<32x8xf32>, vector<8x20xf32>, vector<32x20xf32> -> vector<32x20xf32>
    %c154 = arith.constant 154 : index
    %c0_25 = arith.constant 0 : index
    %80 = vector.load %arg1[%c154, %c0_25] : memref<160x128xf32, #tpu.memory_space<vmem>>, vector<1x20xf32>
    %81 = vector.broadcast %80 : vector<1x20xf32> to vector<32x20xf32>
    %82 = arith.addf %79, %81 : vector<32x20xf32>
    %83 = vector.extract_strided_slice %82 {offsets = [0, 0], sizes = [32, 8], strides = [1, 1]} : vector<32x20xf32> to vector<32x8xf32>
    %84 = arith.addf %56, %83 : vector<32x8xf32>
    %85 = vector.extract_strided_slice %82 {offsets = [0, 8], sizes = [32, 12], strides = [1, 1]} : vector<32x20xf32> to vector<32x12xf32>
    %86 = arith.addf %58, %85 : vector<32x12xf32>
    %c1_i32_26 = arith.constant 1 : i32
    %87 = tpu.dynamic_rotate %84 by %c1_i32_26 dim 0 : vector<32x8xf32>, i32 -> vector<32x8xf32>
    %cst_27 = arith.constant 0.000000e+00 : f32
    %88 = vector.shape_cast %18 : vector<32x1xi1> to vector<32x1xi1>
    %89 = vector.broadcast %88 : vector<32x1xi1> to vector<32x8xi1>
    %90 = vector.broadcast %cst_27 : f32 to vector<32x8xf32>
    %91 = arith.select %89, %87, %90 : vector<32x8xi1>, vector<32x8xf32>
    %92 = tpu.concatenate %91, %84 in 1 : vector<32x8xf32>, vector<32x8xf32> -> vector<32x16xf32>
    %c56 = arith.constant 56 : index
    %c0_28 = arith.constant 0 : index
    %93 = vector.load %arg1[%c56, %c0_28] : memref<160x128xf32, #tpu.memory_space<vmem>>, vector<16x16xf32>
    %cst_29 = arith.constant dense<0.000000e+00> : vector<32x16xf32>
    %94 = tpu.matmul %92, %93, %cst_29 {dimension_numbers = #tpu.dot_dimension_numbers<[1], [0], [0], [1], [0, 0, 1, 1], [], []>} : vector<32x16xf32>, vector<16x16xf32>, vector<32x16xf32> -> vector<32x16xf32>
    %95 = vector.extract_strided_slice %25 {offsets = [0, 32], sizes = [32, 16], strides = [1, 1]} : vector<32x76xf32> to vector<32x16xf32>
    %96 = arith.addf %94, %95 : vector<32x16xf32>
    %97 = vector.extract_strided_slice %96 {offsets = [0, 0], sizes = [32, 8], strides = [1, 1]} : vector<32x16xf32> to vector<32x8xf32>
    %98 = arith.negf %97 : vector<32x8xf32>
    %99 = math.exp %98 : vector<32x8xf32>
    %cst_30 = arith.constant 1.000000e+00 : f32
    %100 = vector.broadcast %cst_30 : f32 to vector<32x8xf32>
    %101 = arith.addf %100, %99 : vector<32x8xf32>
    %102 = arith.divf %100, %101 : vector<32x8xf32>
    %103 = vector.extract_strided_slice %96 {offsets = [0, 8], sizes = [32, 8], strides = [1, 1]} : vector<32x16xf32> to vector<32x8xf32>
    %104 = math.tanh %103 : vector<32x8xf32>
    %105 = arith.mulf %102, %104 : vector<32x8xf32>
    %c104 = arith.constant 104 : index
    %c0_31 = arith.constant 0 : index
    %106 = vector.load %arg1[%c104, %c0_31] : memref<160x128xf32, #tpu.memory_space<vmem>>, vector<8x20xf32>
    %cst_32 = arith.constant dense<0.000000e+00> : vector<32x20xf32>
    %107 = tpu.matmul %105, %106, %cst_32 {dimension_numbers = #tpu.dot_dimension_numbers<[1], [0], [0], [1], [0, 0, 1, 1], [], []>} : vector<32x8xf32>, vector<8x20xf32>, vector<32x20xf32> -> vector<32x20xf32>
    %c155 = arith.constant 155 : index
    %c0_33 = arith.constant 0 : index
    %108 = vector.load %arg1[%c155, %c0_33] : memref<160x128xf32, #tpu.memory_space<vmem>>, vector<1x20xf32>
    %109 = vector.broadcast %108 : vector<1x20xf32> to vector<32x20xf32>
    %110 = arith.addf %107, %109 : vector<32x20xf32>
    %111 = vector.extract_strided_slice %110 {offsets = [0, 0], sizes = [32, 8], strides = [1, 1]} : vector<32x20xf32> to vector<32x8xf32>
    %112 = arith.addf %84, %111 : vector<32x8xf32>
    %113 = vector.extract_strided_slice %110 {offsets = [0, 8], sizes = [32, 12], strides = [1, 1]} : vector<32x20xf32> to vector<32x12xf32>
    %114 = arith.addf %86, %113 : vector<32x12xf32>
    %c2_i32_34 = arith.constant 2 : i32
    %115 = tpu.dynamic_rotate %112 by %c2_i32_34 dim 0 : vector<32x8xf32>, i32 -> vector<32x8xf32>
    %cst_35 = arith.constant 0.000000e+00 : f32
    %116 = vector.shape_cast %20 : vector<32x1xi1> to vector<32x1xi1>
    %117 = vector.broadcast %116 : vector<32x1xi1> to vector<32x8xi1>
    %118 = vector.broadcast %cst_35 : f32 to vector<32x8xf32>
    %119 = arith.select %117, %115, %118 : vector<32x8xi1>, vector<32x8xf32>
    %120 = tpu.concatenate %119, %112 in 1 : vector<32x8xf32>, vector<32x8xf32> -> vector<32x16xf32>
    %c72 = arith.constant 72 : index
    %c0_36 = arith.constant 0 : index
    %121 = vector.load %arg1[%c72, %c0_36] : memref<160x128xf32, #tpu.memory_space<vmem>>, vector<16x16xf32>
    %cst_37 = arith.constant dense<0.000000e+00> : vector<32x16xf32>
    %122 = tpu.matmul %120, %121, %cst_37 {dimension_numbers = #tpu.dot_dimension_numbers<[1], [0], [0], [1], [0, 0, 1, 1], [], []>} : vector<32x16xf32>, vector<16x16xf32>, vector<32x16xf32> -> vector<32x16xf32>
    %123 = vector.extract_strided_slice %25 {offsets = [0, 48], sizes = [32, 16], strides = [1, 1]} : vector<32x76xf32> to vector<32x16xf32>
    %124 = arith.addf %122, %123 : vector<32x16xf32>
    %125 = vector.extract_strided_slice %124 {offsets = [0, 0], sizes = [32, 8], strides = [1, 1]} : vector<32x16xf32> to vector<32x8xf32>
    %126 = arith.negf %125 : vector<32x8xf32>
    %127 = math.exp %126 : vector<32x8xf32>
    %cst_38 = arith.constant 1.000000e+00 : f32
    %128 = vector.broadcast %cst_38 : f32 to vector<32x8xf32>
    %129 = arith.addf %128, %127 : vector<32x8xf32>
    %130 = arith.divf %128, %129 : vector<32x8xf32>
    %131 = vector.extract_strided_slice %124 {offsets = [0, 8], sizes = [32, 8], strides = [1, 1]} : vector<32x16xf32> to vector<32x8xf32>
    %132 = math.tanh %131 : vector<32x8xf32>
    %133 = arith.mulf %130, %132 : vector<32x8xf32>
    %c112 = arith.constant 112 : index
    %c0_39 = arith.constant 0 : index
    %134 = vector.load %arg1[%c112, %c0_39] : memref<160x128xf32, #tpu.memory_space<vmem>>, vector<8x20xf32>
    %cst_40 = arith.constant dense<0.000000e+00> : vector<32x20xf32>
    %135 = tpu.matmul %133, %134, %cst_40 {dimension_numbers = #tpu.dot_dimension_numbers<[1], [0], [0], [1], [0, 0, 1, 1], [], []>} : vector<32x8xf32>, vector<8x20xf32>, vector<32x20xf32> -> vector<32x20xf32>
    %c156 = arith.constant 156 : index
    %c0_41 = arith.constant 0 : index
    %136 = vector.load %arg1[%c156, %c0_41] : memref<160x128xf32, #tpu.memory_space<vmem>>, vector<1x20xf32>
    %137 = vector.broadcast %136 : vector<1x20xf32> to vector<32x20xf32>
    %138 = arith.addf %135, %137 : vector<32x20xf32>
    %139 = vector.extract_strided_slice %138 {offsets = [0, 8], sizes = [32, 12], strides = [1, 1]} : vector<32x20xf32> to vector<32x12xf32>
    %140 = arith.addf %114, %139 : vector<32x12xf32>
    %cst_42 = arith.constant 0.000000e+00 : f32
    %141 = vector.broadcast %cst_42 : f32 to vector<32x12xf32>
    %142 = arith.maximumf %140, %141 : vector<32x12xf32>
    %c120 = arith.constant 120 : index
    %c0_43 = arith.constant 0 : index
    %143 = vector.load %arg1[%c120, %c0_43] : memref<160x128xf32, #tpu.memory_space<vmem>>, vector<12x12xf32>
    %cst_44 = arith.constant dense<0.000000e+00> : vector<32x12xf32>
    %144 = tpu.matmul %142, %143, %cst_44 {dimension_numbers = #tpu.dot_dimension_numbers<[1], [0], [0], [1], [0, 0, 1, 1], [], []>} : vector<32x12xf32>, vector<12x12xf32>, vector<32x12xf32> -> vector<32x12xf32>
    %145 = vector.extract_strided_slice %25 {offsets = [0, 64], sizes = [32, 12], strides = [1, 1]} : vector<32x76xf32> to vector<32x12xf32>
    %146 = arith.addf %144, %145 : vector<32x12xf32>
    %cst_45 = arith.constant 0.000000e+00 : f32
    %147 = vector.broadcast %cst_45 : f32 to vector<32x12xf32>
    %148 = arith.maximumf %146, %147 : vector<32x12xf32>
    %c136 = arith.constant 136 : index
    %c0_46 = arith.constant 0 : index
    %149 = vector.load %arg1[%c136, %c0_46] : memref<160x128xf32, #tpu.memory_space<vmem>>, vector<12x128xf32>
    %cst_47 = arith.constant dense<0.000000e+00> : vector<32x128xf32>
    %150 = tpu.matmul %148, %149, %cst_47 {dimension_numbers = #tpu.dot_dimension_numbers<[1], [0], [0], [1], [0, 0, 1, 1], [], []>} : vector<32x12xf32>, vector<12x128xf32>, vector<32x128xf32> -> vector<32x128xf32>
    %c157 = arith.constant 157 : index
    %c0_48 = arith.constant 0 : index
    %151 = vector.load %arg1[%c157, %c0_48] : memref<160x128xf32, #tpu.memory_space<vmem>>, vector<1x128xf32>
    %152 = vector.broadcast %151 : vector<1x128xf32> to vector<32x128xf32>
    %153 = arith.addf %150, %152 : vector<32x128xf32>
    %c0_49 = arith.constant 0 : index
    %c0_50 = arith.constant 0 : index
    %154 = vector.load %arg2[%c0_49, %c0_50] : memref<32x128xf32, #tpu.memory_space<vmem>>, vector<32x128xf32>
    tpu.vector_store %arg2[%c0_49, %c0_50], %153 {strides = array<i32>} : memref<32x128xf32, #tpu.memory_space<vmem>>, vector<32x128xf32>,
    return
  }
}

</mosaic_0001>

<llo_original>
// kernel: wavenet_pallas.1
$region0: #{wavenet_pallas.1}
  #allocation0 [shape = 'u32[]', space=smem, size = 0x4, offset = 0x4, fixed_abs, tag = 'smem constant byte address 0x4 - core index']
  #allocation1 [shape = 'u32[144,128]{1,0:T(1,128)}', space=vmem, size = 0x12000, scoped, tag = 'internal scratch']
  %s0 = inlined_call_operand.vmem [shape: f32[32,14], index: 0, kind: input, shape index: {}]
  %s1 = inlined_call_operand.vmem [shape: f32[160,128], index: 1, kind: input, shape index: {}]
  %s2 = inlined_call_operand.vmem [shape: f32[32,128], index: 2, kind: output, shape index: {}]
  %s3 = sld [smem:[#allocation0]]
  $region18: #{wavenet_pallas.1} parent=0
    _
  %s5 = ssub.s32 1, %s3
  %s6 = scalar_select 0, %s5, %s3
  // Predicated region
  $region2: #{wavenet_pallas.1} parent=0 // pred_check
    _
  $region3: #{wavenet_pallas.1} parent=0 // pred_check_branch
    %8 = sbr.rel (0) target = $region5
  $region4: #{wavenet_pallas.1} parent=0 // pred_region
    _
  $region5: #{wavenet_pallas.1} parent=0 // pred_fallthru
    _
  // Predicated region
  $region6: #{wavenet_pallas.1} parent=0 // pred_check
    _
  $region7: #{wavenet_pallas.1} parent=0 // pred_check_branch
    %10 = sbr.rel (0) target = $region9
  $region8: #{wavenet_pallas.1} parent=0 // pred_region
    _
  $region9: #{wavenet_pallas.1} parent=0 // pred_fallthru
    _
  %v11 = vlaneseq
  %v12 = vshrl.u32 %v11, 7
  %v13 = vadd.s32 %v12, 8
  %v14 = vadd.s32 %v12, 16
  %v15 = vadd.s32 %v12, 24
  %vm16 = vcmp.lt.s32.totalorder %v12, 0
  %v17 = vsub.s32 0, %v12
  %v18 = vsel %vm16, %v17, %v12
  %v19 = vshrl.u32 %v18, 4
  %v20 = vand.u32 %v18, 15
  %v21 = vsub.s32 0, %v20
  %v22 = vsel %vm16, %v21, %v20
  %vm23 = vcmp.lt.s32.totalorder %v13, 0
  %v24 = vsub.s32 0, %v13
  %v25 = vsel %vm23, %v24, %v13
  %v26 = vshrl.u32 %v25, 4
  %v27 = vand.u32 %v25, 15
  %v28 = vsub.s32 0, %v27
  %v29 = vsel %vm23, %v28, %v27
  %vm30 = vcmp.lt.s32.totalorder %v14, 0
  %v31 = vsub.s32 0, %v14
  %v32 = vsel %vm30, %v31, %v14
  %v33 = vshrl.u32 %v32, 4
  %v34 = vand.u32 %v32, 15
  %v35 = vsub.s32 0, %v34
  %v36 = vsel %vm30, %v35, %v34
  %vm37 = vcmp.lt.s32.totalorder %v15, 0
  %v38 = vsub.s32 0, %v15
  %v39 = vsel %vm37, %v38, %v15
  %v40 = vshrl.u32 %v39, 4
  %v41 = vand.u32 %v39, 15
  %v42 = vsub.s32 0, %v41
  %v43 = vsel %vm37, %v42, %v41
  %vm44 = vcmp.ne.s32.totalorder %v22, 0
  %vm45 = vcmp.ne.s32.totalorder %v29, 0
  %vm46 = vcmp.ne.s32.totalorder %v36, 0
  %vm47 = vcmp.ne.s32.totalorder %v43, 0
  %vm48 = vcmp.lt.s32.totalorder %v22, 0
  %vm49 = vcmp.lt.s32.totalorder %v29, 0
  %vm50 = vcmp.lt.s32.totalorder %v36, 0
  %vm51 = vcmp.lt.s32.totalorder %v43, 0
  %vm52 = vmand %vm48, %vm44
  %vm53 = vmand %vm49, %vm45
  %vm54 = vmand %vm50, %vm46
  %vm55 = vmand %vm51, %vm47
  %v56 = vadd.s32 %v22, 16
  %v57 = vadd.s32 %v29, 16
  %v58 = vadd.s32 %v36, 16
  %v59 = vadd.s32 %v43, 16
  %v60 = vsel %vm52, %v56, %v22
  %v61 = vsel %vm53, %v57, %v29
  %v62 = vsel %vm54, %v58, %v36
  %v63 = vsel %vm55, %v59, %v43
  %vm64 = vcmp.ge.s32.totalorder %v60, 1
  %vm65 = vcmp.ge.s32.totalorder %v61, 1
  %vm66 = vcmp.ge.s32.totalorder %v62, 1
  %vm67 = vcmp.ge.s32.totalorder %v63, 1
  %vm68 = vcmp.ge.s32.totalorder %v60, 2
  %vm69 = vcmp.ge.s32.totalorder %v61, 2
  %vm70 = vcmp.ge.s32.totalorder %v62, 2
  %vm71 = vcmp.ge.s32.totalorder %v63, 2
  %v72 = vld [vmem:[%s0] sm:$0xff]
  %v73 = vld [vmem:[%s0 + $0x8] sm:$0xff]
  %v74 = vld [vmem:[%s0 + $0x10] sm:$0xff]
  %v75 = vld [vmem:[%s0 + $0x18] sm:$0xff]
  %v76 = vld [vmem:[%s1] sm:$0xff]
  %v77 = vld [vmem:[%s1 + $0x8] sm:$0x3f]
  %vm78 = vcmask 113664
  %v80 = vsel %vm78, %v72, 0
  %v83 = vsel %vm78, %v73, 0
  %v86 = vsel %vm78, %v74, 0
  %v89 = vsel %vm78, %v75, 0
  %vm91 = vcmask 1045504
  %v93 = vsel %vm91, %v77, 0
  %95 = vmatprep.subr.mxu0 0.0
  %96 = vmatpush1.msra.mxu0 %v76
  %97 = vmatprep.subr.mxu0 0.0
  %98 = vmatpush1.msra.mxu0 %v93
  %99 = vmatprep.subr.mxu0 0.0
  %100 = vmatpush1.msra.mxu0 0.0
  %101 = vmatprep.subr.mxu0 0.0
  %102 = vmatpush1.msra.mxu0 0.0
  %103 = vmatprep.subr.mxu0 0.0
  %104 = vmatpush1.msra.mxu0 0.0
  %105 = vmatprep.subr.mxu0 0.0
  %106 = vmatpush1.msra.mxu0 0.0
  %107 = vmatprep.subr.mxu0 0.0
  %108 = vmatpush1.msra.mxu0 0.0
  %109 = vmatprep.subr.mxu0 0.0
  %110 = vmatpush1.msra.mxu0 0.0
  %111 = vmatprep.subr.mxu0 0.0
  %112 = vmatpush1.msra.mxu0 0.0
  %113 = vmatprep.subr.mxu0 0.0
  %114 = vmatpush1.msra.mxu0 0.0
  %115 = vmatprep.subr.mxu0 0.0
  %116 = vmatpush1.msra.mxu0 0.0
  %117 = vmatprep.subr.mxu0 0.0
  %118 = vmatpush1.msra.mxu0 0.0
  %119 = vmatprep.subr.mxu0 0.0
  %120 = vmatpush1.msra.mxu0 0.0
  %121 = vmatprep.subr.mxu0 0.0
  %122 = vmatpush1.msra.mxu0 0.0
  %123 = vmatprep.subr.mxu0 0.0
  %124 = vmatpush1.msra.mxu0 0.0
  %125 = vmatprep.subr.mxu0 0.0
  %126 = vmatpush1.msra.mxu0 0.0
  %127 = vmatprep.subr.mxu0 0.0
  %128 = vmatpush1.msra.mxu0 0.0
  %129 = vmatprep.subr.mxu0 0.0
  %130 = vmatpush1.msra.mxu0 0.0
  %131 = vmatprep.subr.mxu0 0.0
  %132 = vmatpush1.msra.mxu0 0.0
  %133 = vmatprep.subr.mxu0 0.0
  %134 = vmatpush1.msra.mxu0 0.0
  %135 = vmatprep.subr.mxu0 0.0
  %136 = vmatpush1.msra.mxu0 0.0
  %137 = vmatprep.subr.mxu0 0.0
  %138 = vmatpush1.msra.mxu0 0.0
  %139 = vmatprep.subr.mxu0 0.0
  %140 = vmatpush1.msra.mxu0 0.0
  %141 = vmatprep.subr.mxu0 0.0
  %142 = vmatpush1.msra.mxu0 0.0
  %143 = vmatprep.subr.mxu0 0.0
  %144 = vmatpush1.msra.mxu0 0.0
  %145 = vmatprep.subr.mxu0 0.0
  %146 = vmatpush1.msra.mxu0 0.0
  %147 = vmatprep.subr.mxu0 0.0
  %148 = vmatpush1.msra.mxu0 0.0
  %149 = vmatprep.subr.mxu0 0.0
  %150 = vmatpush1.msra.mxu0 0.0
  %151 = vmatprep.subr.mxu0 0.0
  %152 = vmatpush1.msra.mxu0 0.0
  %153 = vmatprep.subr.mxu0 0.0
  %154 = vmatpush1.msra.mxu0 0.0
  %155 = vmatprep.subr.mxu0 0.0
  %156 = vmatpush1.msra.mxu0 0.0
  %157 = vmatprep.subr.mxu0 0.0
  %158 = vmatpush1.msra.mxu0 0.0
  %159 = vmatprep.mubr.f32.mxu0 0.0
  %160 = vmatmul.mubr.f32.gmra.mrb[0].mxu0 %v80
  %v161 = vpop.f32.mrb[0].mxu0
  %v162 = vadd.f32 0.0, %v161
  %v163 = vpop.f32.mrb[0].mxu0
  %164 = vmatprep.mubr.f32.mxu0 0.0
  %165 = vmatmul.mubr.f32.gmra.mrb[0].mxu0 %v83
  %v166 = vpop.f32.mrb[0].mxu0
  %v167 = vadd.f32 0.0, %v166
  %v168 = vpop.f32.mrb[0].mxu0
  %169 = vmatprep.mubr.f32.mxu0 0.0
  %170 = vmatmul.mubr.f32.gmra.mrb[0].mxu0 %v86
  %v171 = vpop.f32.mrb[0].mxu0
  %v172 = vadd.f32 0.0, %v171
  %v173 = vpop.f32.mrb[0].mxu0
  %174 = vmatprep.mubr.f32.mxu0 0.0
  %175 = vmatmul.mubr.f32.gmra.mrb[0].mxu0 %v89
  %v176 = vpop.f32.mrb[0].mxu0
  %v177 = vadd.f32 0.0, %v176
  %v178 = vpop.f32.mrb[0].mxu0
  %179 = vdwg.mxu0
  %v180 = vld [vmem:[%s1 + $0x10] sm:$0xff]
  %v181 = vld [vmem:[%s1 + $0x98] sm:$0x1]
  %v182 = vlaneseq
  %v183 = vshrl.u32 %v182, 7
  %v184 = vsub.s32 0, %v183
  %v185 = vrot.slane %v181, %v184
  %vm186 = vcmask 64512
  %v188 = vsel %vm186, %v162, 0
  %v191 = vsel %vm186, %v167, 0
  %v194 = vsel %vm186, %v172, 0
  %v197 = vsel %vm186, %v177, 0
  %199 = vmatprep.subr.mxu0 0.0
  %200 = vmatpush1.msra.mxu0 %v180
  %201 = vmatprep.subr.mxu0 0.0
  %202 = vmatpush1.msra.mxu0 0.0
  %203 = vmatprep.subr.mxu0 0.0
  %204 = vmatpush1.msra.mxu0 0.0
  %205 = vmatprep.subr.mxu0 0.0
  %206 = vmatpush1.msra.mxu0 0.0
  %207 = vmatprep.subr.mxu0 0.0
  %208 = vmatpush1.msra.mxu0 0.0
  %209 = vmatprep.subr.mxu0 0.0
  %210 = vmatpush1.msra.mxu0 0.0
  %211 = vmatprep.subr.mxu0 0.0
  %212 = vmatpush1.msra.mxu0 0.0
  %213 = vmatprep.subr.mxu0 0.0
  %214 = vmatpush1.msra.mxu0 0.0
  %215 = vmatprep.subr.mxu0 0.0
  %216 = vmatpush1.msra.mxu0 0.0
  %217 = vmatprep.subr.mxu0 0.0
  %218 = vmatpush1.msra.mxu0 0.0
  %219 = vmatprep.subr.mxu0 0.0
  %220 = vmatpush1.msra.mxu0 0.0
  %221 = vmatprep.subr.mxu0 0.0
  %222 = vmatpush1.msra.mxu0 0.0
  %223 = vmatprep.subr.mxu0 0.0
  %224 = vmatpush1.msra.mxu0 0.0
  %225 = vmatprep.subr.mxu0 0.0
  %226 = vmatpush1.msra.mxu0 0.0
  %227 = vmatprep.subr.mxu0 0.0
  %228 = vmatpush1.msra.mxu0 0.0
  %229 = vmatprep.subr.mxu0 0.0
  %230 = vmatpush1.msra.mxu0 0.0
  %231 = vmatprep.subr.mxu0 0.0
  %232 = vmatpush1.msra.mxu0 0.0
  %233 = vmatprep.subr.mxu0 0.0
  %234 = vmatpush1.msra.mxu0 0.0
  %235 = vmatprep.subr.mxu0 0.0
  %236 = vmatpush1.msra.mxu0 0.0
  %237 = vmatprep.subr.mxu0 0.0
  %238 = vmatpush1.msra.mxu0 0.0
  %239 = vmatprep.subr.mxu0 0.0
  %240 = vmatpush1.msra.mxu0 0.0
  %241 = vmatprep.subr.mxu0 0.0
  %242 = vmatpush1.msra.mxu0 0.0
  %243 = vmatprep.subr.mxu0 0.0
  %244 = vmatpush1.msra.mxu0 0.0
  %245 = vmatprep.subr.mxu0 0.0
  %246 = vmatpush1.msra.mxu0 0.0
  %247 = vmatprep.subr.mxu0 0.0
  %248 = vmatpush1.msra.mxu0 0.0
  %249 = vmatprep.subr.mxu0 0.0
  %250 = vmatpush1.msra.mxu0 0.0
  %251 = vmatprep.subr.mxu0 0.0
  %252 = vmatpush1.msra.mxu0 0.0
  %253 = vmatprep.subr.mxu0 0.0
  %254 = vmatpush1.msra.mxu0 0.0
  %255 = vmatprep.subr.mxu0 0.0
  %256 = vmatpush1.msra.mxu0 0.0
  %257 = vmatprep.subr.mxu0 0.0
  %258 = vmatpush1.msra.mxu0 0.0
  %259 = vmatprep.subr.mxu0 0.0
  %260 = vmatpush1.msra.mxu0 0.0
  %261 = vmatprep.subr.mxu0 0.0
  %262 = vmatpush1.msra.mxu0 0.0
  %263 = vmatprep.mubr.f32.mxu0 0.0
  %264 = vmatmul.mubr.f32.gmra.mrb[0].mxu0 %v188
  %v265 = vpop.f32.mrb[0].mxu0
  %v266 = vadd.f32 %v185, %v265
  %v267 = vpop.f32.mrb[0].mxu0
  %268 = vmatprep.mubr.f32.mxu0 0.0
  %269 = vmatmul.mubr.f32.gmra.mrb[0].mxu0 %v191
  %v270 = vpop.f32.mrb[0].mxu0
  %v271 = vadd.f32 %v185, %v270
  %v272 = vpop.f32.mrb[0].mxu0
  %273 = vmatprep.mubr.f32.mxu0 0.0
  %274 = vmatmul.mubr.f32.gmra.mrb[0].mxu0 %v194
  %v275 = vpop.f32.mrb[0].mxu0
  %v276 = vadd.f32 %v185, %v275
  %v277 = vpop.f32.mrb[0].mxu0
  %278 = vmatprep.mubr.f32.mxu0 0.0
  %279 = vmatmul.mubr.f32.gmra.mrb[0].mxu0 %v197
  %v280 = vpop.f32.mrb[0].mxu0
  %v281 = vadd.f32 %v185, %v280
  %v282 = vpop.f32.mrb[0].mxu0
  %283 = vdwg.mxu0
  %v284 = vrot.slane %v162, 7
  %v285 = vrot.slane %v167, 7
  %v286 = vrot.slane %v172, 7
  %v287 = vrot.slane %v177, 7
  %vm288 = vcmp.lt.s32.totalorder %v12, 1
  %v289 = vsel %vm288, %v286, %v287
  %v290 = vsel %vm288, %v285, %v286
  %v291 = vsel %vm288, %v284, %v285
  %v292 = vsel %vm288, %v287, %v284
  %v293 = vsel %vm64, 1, 0
  %v294 = vsel %vm65, 1, 0
  %v295 = vsel %vm66, 1, 0
  %v296 = vsel %vm67, 1, 0
  %vm297 = vcmp.eq.s32.totalorder %v293, 1
  %vm298 = vcmp.eq.s32.totalorder %v294, 1
  %vm299 = vcmp.eq.s32.totalorder %v295, 1
  %vm300 = vcmp.eq.s32.totalorder %v296, 1
  %v301 = vsel %vm297, %v292, 0.0
  %v302 = vsel %vm298, %v291, 0.0
  %v303 = vsel %vm299, %v290, 0.0
  %v304 = vsel %vm300, %v289, 0.0
  %305 = vrot.lane.b32.xlu0 %v162, 8
  %v306 = vpop.permute.xlu0 %305
  %307 = vrot.lane.b32.xlu0 %v167, 8
  %v308 = vpop.permute.xlu0 %307
  %309 = vrot.lane.b32.xlu0 %v172, 8
  %v310 = vpop.permute.xlu0 %309
  %311 = vrot.lane.b32.xlu0 %v177, 8
  %v312 = vpop.permute.xlu0 %311
  %v317 = vsel %vm186, %v301, %v306
  %v318 = vsel %vm186, %v302, %v308
  %v319 = vsel %vm186, %v303, %v310
  %v320 = vsel %vm186, %v304, %v312
  %v321 = vld [vmem:[%s1 + $0x18] sm:$0xff]
  %v322 = vld [vmem:[%s1 + $0x20] sm:$0xff]
  %323 = vrot.lane.b32.xlu0 %v162, 120
  %v324 = vpop.permute.xlu0 %323
  %325 = vrot.lane.b32.xlu0 %v167, 120
  %v326 = vpop.permute.xlu0 %325
  %327 = vrot.lane.b32.xlu0 %v172, 120
  %v328 = vpop.permute.xlu0 %327
  %329 = vrot.lane.b32.xlu0 %v177, 120
  %v330 = vpop.permute.xlu0 %329
  %vm335 = vcmask 130048
  %v337 = vsel %vm335, %v317, 0
  %v340 = vsel %vm335, %v318, 0
  %v343 = vsel %vm335, %v319, 0
  %v346 = vsel %vm335, %v320, 0
  %348 = vmatprep.subr.mxu0 0.0
  %349 = vmatpush1.msra.mxu0 %v321
  %350 = vmatprep.subr.mxu0 0.0
  %351 = vmatpush1.msra.mxu0 %v322
  %352 = vmatprep.subr.mxu0 0.0
  %353 = vmatpush1.msra.mxu0 0.0
  %354 = vmatprep.subr.mxu0 0.0
  %355 = vmatpush1.msra.mxu0 0.0
  %356 = vmatprep.subr.mxu0 0.0
  %357 = vmatpush1.msra.mxu0 0.0
  %358 = vmatprep.subr.mxu0 0.0
  %359 = vmatpush1.msra.mxu0 0.0
  %360 = vmatprep.subr.mxu0 0.0
  %361 = vmatpush1.msra.mxu0 0.0
  %362 = vmatprep.subr.mxu0 0.0
  %363 = vmatpush1.msra.mxu0 0.0
  %364 = vmatprep.subr.mxu0 0.0
  %365 = vmatpush1.msra.mxu0 0.0
  %366 = vmatprep.subr.mxu0 0.0
  %367 = vmatpush1.msra.mxu0 0.0
  %368 = vmatprep.subr.mxu0 0.0
  %369 = vmatpush1.msra.mxu0 0.0
  %370 = vmatprep.subr.mxu0 0.0
  %371 = vmatpush1.msra.mxu0 0.0
  %372 = vmatprep.subr.mxu0 0.0
  %373 = vmatpush1.msra.mxu0 0.0
  %374 = vmatprep.subr.mxu0 0.0
  %375 = vmatpush1.msra.mxu0 0.0
  %376 = vmatprep.subr.mxu0 0.0
  %377 = vmatpush1.msra.mxu0 0.0
  %378 = vmatprep.subr.mxu0 0.0
  %379 = vmatpush1.msra.mxu0 0.0
  %380 = vmatprep.subr.mxu0 0.0
  %381 = vmatpush1.msra.mxu0 0.0
  %382 = vmatprep.subr.mxu0 0.0
  %383 = vmatpush1.msra.mxu0 0.0
  %384 = vmatprep.subr.mxu0 0.0
  %385 = vmatpush1.msra.mxu0 0.0
  %386 = vmatprep.subr.mxu0 0.0
  %387 = vmatpush1.msra.mxu0 0.0
  %388 = vmatprep.subr.mxu0 0.0
  %389 = vmatpush1.msra.mxu0 0.0
  %390 = vmatprep.subr.mxu0 0.0
  %391 = vmatpush1.msra.mxu0 0.0
  %392 = vmatprep.subr.mxu0 0.0
  %393 = vmatpush1.msra.mxu0 0.0
  %394 = vmatprep.subr.mxu0 0.0
  %395 = vmatpush1.msra.mxu0 0.0
  %396 = vmatprep.subr.mxu0 0.0
  %397 = vmatpush1.msra.mxu0 0.0
  %398 = vmatprep.subr.mxu0 0.0
  %399 = vmatpush1.msra.mxu0 0.0
  %400 = vmatprep.subr.mxu0 0.0
  %401 = vmatpush1.msra.mxu0 0.0
  %402 = vmatprep.subr.mxu0 0.0
  %403 = vmatpush1.msra.mxu0 0.0
  %404 = vmatprep.subr.mxu0 0.0
  %405 = vmatpush1.msra.mxu0 0.0
  %406 = vmatprep.subr.mxu0 0.0
  %407 = vmatpush1.msra.mxu0 0.0
  %408 = vmatprep.subr.mxu0 0.0
  %409 = vmatpush1.msra.mxu0 0.0
  %410 = vmatprep.subr.mxu0 0.0
  %411 = vmatpush1.msra.mxu0 0.0
  %412 = vmatprep.mubr.f32.mxu0 0.0
  %413 = vmatmul.mubr.f32.gmra.mrb[0].mxu0 %v337
  %v414 = vpop.f32.mrb[0].mxu0
  %v415 = vadd.f32 %v324, %v414
  %v416 = vpop.f32.mrb[0].mxu0
  %417 = vmatprep.mubr.f32.mxu0 0.0
  %418 = vmatmul.mubr.f32.gmra.mrb[0].mxu0 %v340
  %v419 = vpop.f32.mrb[0].mxu0
  %v420 = vadd.f32 %v326, %v419
  %v421 = vpop.f32.mrb[0].mxu0
  %422 = vmatprep.mubr.f32.mxu0 0.0
  %423 = vmatmul.mubr.f32.gmra.mrb[0].mxu0 %v343
  %v424 = vpop.f32.mrb[0].mxu0
  %v425 = vadd.f32 %v328, %v424
  %v426 = vpop.f32.mrb[0].mxu0
  %427 = vmatprep.mubr.f32.mxu0 0.0
  %428 = vmatmul.mubr.f32.gmra.mrb[0].mxu0 %v346
  %v429 = vpop.f32.mrb[0].mxu0
  %v430 = vadd.f32 %v330, %v429
  %v431 = vpop.f32.mrb[0].mxu0
  %432 = vdwg.mxu0
  %v433 = vxor.u32 %v415, 2147483648
  %v434 = vxor.u32 %v420, 2147483648
  %v435 = vxor.u32 %v425, 2147483648
  %v436 = vxor.u32 %v430, 2147483648
  %v437 = vmul.f32 %v433, 1.442695
  %v438 = vpow.pop %v437
  %v439 = vmul.f32 %v434, 1.442695
  %v440 = vpow.pop %v439
  %v441 = vmul.f32 %v435, 1.442695
  %v442 = vpow.pop %v441
  %v443 = vmul.f32 %v436, 1.442695
  %v444 = vpow.pop %v443
  %v445 = vadd.f32 %v438, 1.0
  %v446 = vadd.f32 %v440, 1.0
  %v447 = vadd.f32 %v442, 1.0
  %v448 = vadd.f32 %v444, 1.0
  %v449 = vrcp.pop %v445
  %v450 = vmul.f32 1.0, %v449
  %v451 = vrcp.pop %v446
  %v452 = vmul.f32 1.0, %v451
  %v453 = vrcp.pop %v447
  %v454 = vmul.f32 1.0, %v453
  %v455 = vrcp.pop %v448
  %v456 = vmul.f32 1.0, %v455
  %v457 = vtanh.pop %v415
  %v458 = vtanh.pop %v420
  %v459 = vtanh.pop %v425
  %v460 = vtanh.pop %v430
  %465 = vrot.lane.b32.xlu0 %v457, 120
  %v466 = vpop.permute.xlu0 %465
  %467 = vrot.lane.b32.xlu0 %v458, 120
  %v468 = vpop.permute.xlu0 %467
  %469 = vrot.lane.b32.xlu0 %v459, 120
  %v470 = vpop.permute.xlu0 %469
  %471 = vrot.lane.b32.xlu0 %v460, 120
  %v472 = vpop.permute.xlu0 %471
  %v477 = vmul.f32 %v450, %v466
  %v478 = vmul.f32 %v452, %v468
  %v479 = vmul.f32 %v454, %v470
  %v480 = vmul.f32 %v456, %v472
  %v481 = vld [vmem:[%s1 + $0x58] sm:$0xff]
  %v482 = vld [vmem:[%s1 + $0x99] sm:$0x1]
  %v483 = vlaneseq
  %v484 = vshrl.u32 %v483, 7
  %v485 = vsub.s32 0, %v484
  %v486 = vrot.slane %v482, %v485
  %v488 = vsel %vm186, %v477, 0
  %v491 = vsel %vm186, %v478, 0
  %v494 = vsel %vm186, %v479, 0
  %v497 = vsel %vm186, %v480, 0
  %499 = vmatprep.subr.mxu0 0.0
  %500 = vmatpush1.msra.mxu0 %v481
  %501 = vmatprep.subr.mxu0 0.0
  %502 = vmatpush1.msra.mxu0 0.0
  %503 = vmatprep.subr.mxu0 0.0
  %504 = vmatpush1.msra.mxu0 0.0
  %505 = vmatprep.subr.mxu0 0.0
  %506 = vmatpush1.msra.mxu0 0.0
  %507 = vmatprep.subr.mxu0 0.0
  %508 = vmatpush1.msra.mxu0 0.0
  %509 = vmatprep.subr.mxu0 0.0
  %510 = vmatpush1.msra.mxu0 0.0
  %511 = vmatprep.subr.mxu0 0.0
  %512 = vmatpush1.msra.mxu0 0.0
  %513 = vmatprep.subr.mxu0 0.0
  %514 = vmatpush1.msra.mxu0 0.0
  %515 = vmatprep.subr.mxu0 0.0
  %516 = vmatpush1.msra.mxu0 0.0
  %517 = vmatprep.subr.mxu0 0.0
  %518 = vmatpush1.msra.mxu0 0.0
  %519 = vmatprep.subr.mxu0 0.0
  %520 = vmatpush1.msra.mxu0 0.0
  %521 = vmatprep.subr.mxu0 0.0
  %522 = vmatpush1.msra.mxu0 0.0
  %523 = vmatprep.subr.mxu0 0.0
  %524 = vmatpush1.msra.mxu0 0.0
  %525 = vmatprep.subr.mxu0 0.0
  %526 = vmatpush1.msra.mxu0 0.0
  %527 = vmatprep.subr.mxu0 0.0
  %528 = vmatpush1.msra.mxu0 0.0
  %529 = vmatprep.subr.mxu0 0.0
  %530 = vmatpush1.msra.mxu0 0.0
  %531 = vmatprep.subr.mxu0 0.0
  %532 = vmatpush1.msra.mxu0 0.0
  %533 = vmatprep.subr.mxu0 0.0
  %534 = vmatpush1.msra.mxu0 0.0
  %535 = vmatprep.subr.mxu0 0.0
  %536 = vmatpush1.msra.mxu0 0.0
  %537 = vmatprep.subr.mxu0 0.0
  %538 = vmatpush1.msra.mxu0 0.0
  %539 = vmatprep.subr.mxu0 0.0
  %540 = vmatpush1.msra.mxu0 0.0
  %541 = vmatprep.subr.mxu0 0.0
  %542 = vmatpush1.msra.mxu0 0.0
  %543 = vmatprep.subr.mxu0 0.0
  %544 = vmatpush1.msra.mxu0 0.0
  %545 = vmatprep.subr.mxu0 0.0
  %546 = vmatpush1.msra.mxu0 0.0
  %547 = vmatprep.subr.mxu0 0.0
  %548 = vmatpush1.msra.mxu0 0.0
  %549 = vmatprep.subr.mxu0 0.0
  %550 = vmatpush1.msra.mxu0 0.0
  %551 = vmatprep.subr.mxu0 0.0
  %552 = vmatpush1.msra.mxu0 0.0
  %553 = vmatprep.subr.mxu0 0.0
  %554 = vmatpush1.msra.mxu0 0.0
  %555 = vmatprep.subr.mxu0 0.0
  %556 = vmatpush1.msra.mxu0 0.0
  %557 = vmatprep.subr.mxu0 0.0
  %558 = vmatpush1.msra.mxu0 0.0
  %559 = vmatprep.subr.mxu0 0.0
  %560 = vmatpush1.msra.mxu0 0.0
  %561 = vmatprep.subr.mxu0 0.0
  %562 = vmatpush1.msra.mxu0 0.0
  %563 = vmatprep.mubr.f32.mxu0 0.0
  %564 = vmatmul.mubr.f32.gmra.mrb[0].mxu0 %v488
  %v565 = vpop.f32.mrb[0].mxu0
  %v566 = vadd.f32 %v486, %v565
  %v567 = vpop.f32.mrb[0].mxu0
  %568 = vmatprep.mubr.f32.mxu0 0.0
  %569 = vmatmul.mubr.f32.gmra.mrb[0].mxu0 %v491
  %v570 = vpop.f32.mrb[0].mxu0
  %v571 = vadd.f32 %v486, %v570
  %v572 = vpop.f32.mrb[0].mxu0
  %573 = vmatprep.mubr.f32.mxu0 0.0
  %574 = vmatmul.mubr.f32.gmra.mrb[0].mxu0 %v494
  %v575 = vpop.f32.mrb[0].mxu0
  %v576 = vadd.f32 %v486, %v575
  %v577 = vpop.f32.mrb[0].mxu0
  %578 = vmatprep.mubr.f32.mxu0 0.0
  %579 = vmatmul.mubr.f32.gmra.mrb[0].mxu0 %v497
  %v580 = vpop.f32.mrb[0].mxu0
  %v581 = vadd.f32 %v486, %v580
  %v582 = vpop.f32.mrb[0].mxu0
  %583 = vdwg.mxu0
  %v584 = vadd.f32 %v162, %v566
  %v585 = vadd.f32 %v167, %v571
  %v586 = vadd.f32 %v172, %v576
  %v587 = vadd.f32 %v177, %v581
  %592 = vrot.lane.b32.xlu0 %v566, 120
  %v593 = vpop.permute.xlu0 %592
  %594 = vrot.lane.b32.xlu0 %v571, 120
  %v595 = vpop.permute.xlu0 %594
  %596 = vrot.lane.b32.xlu0 %v576, 120
  %v597 = vpop.permute.xlu0 %596
  %598 = vrot.lane.b32.xlu0 %v581, 120
  %v599 = vpop.permute.xlu0 %598
  %v604 = vadd.f32 %v266, %v593
  %v605 = vadd.f32 %v271, %v595
  %v606 = vadd.f32 %v276, %v597
  %v607 = vadd.f32 %v281, %v599
  %v608 = vrot.slane %v584, 6
  %v609 = vrot.slane %v585, 6
  %v610 = vrot.slane %v586, 6
  %v611 = vrot.slane %v587, 6
  %vm612 = vcmp.lt.s32.totalorder %v12, 2
  %v613 = vsel %vm612, %v610, %v611
  %v614 = vsel %vm612, %v609, %v610
  %v615 = vsel %vm612, %v608, %v609
  %v616 = vsel %vm612, %v611, %v608
  %v617 = vsel %vm68, 1, 0
  %v618 = vsel %vm69, 1, 0
  %v619 = vsel %vm70, 1, 0
  %v620 = vsel %vm71, 1, 0
  %vm621 = vcmp.eq.s32.totalorder %v617, 1
  %vm622 = vcmp.eq.s32.totalorder %v618, 1
  %vm623 = vcmp.eq.s32.totalorder %v619, 1
  %vm624 = vcmp.eq.s32.totalorder %v620, 1
  %v625 = vsel %vm621, %v616, 0.0
  %v626 = vsel %vm622, %v615, 0.0
  %v627 = vsel %vm623, %v614, 0.0
  %v628 = vsel %vm624, %v613, 0.0
  %633 = vrot.lane.b32.xlu0 %v584, 8
  %v634 = vpop.permute.xlu0 %633
  %635 = vrot.lane.b32.xlu0 %v585, 8
  %v636 = vpop.permute.xlu0 %635
  %637 = vrot.lane.b32.xlu0 %v586, 8
  %v638 = vpop.permute.xlu0 %637
  %639 = vrot.lane.b32.xlu0 %v587, 8
  %v640 = vpop.permute.xlu0 %639
  %v645 = vsel %vm186, %v625, %v634
  %v646 = vsel %vm186, %v626, %v636
  %v647 = vsel %vm186, %v627, %v638
  %v648 = vsel %vm186, %v628, %v640
  %v649 = vld [vmem:[%s1 + $0x28] sm:$0xff]
  %v650 = vld [vmem:[%s1 + $0x30] sm:$0xff]
  %651 = vrot.lane.b32.xlu0 %v162, 104
  %v652 = vpop.permute.xlu0 %651
  %653 = vrot.lane.b32.xlu0 %v167, 104
  %v654 = vpop.permute.xlu0 %653
  %655 = vrot.lane.b32.xlu0 %v172, 104
  %v656 = vpop.permute.xlu0 %655
  %657 = vrot.lane.b32.xlu0 %v177, 104
  %v658 = vpop.permute.xlu0 %657
  %v664 = vsel %vm335, %v645, 0
  %v667 = vsel %vm335, %v646, 0
  %v670 = vsel %vm335, %v647, 0
  %v673 = vsel %vm335, %v648, 0
  %675 = vmatprep.subr.mxu0 0.0
  %676 = vmatpush1.msra.mxu0 %v649
  %677 = vmatprep.subr.mxu0 0.0
  %678 = vmatpush1.msra.mxu0 %v650
  %679 = vmatprep.subr.mxu0 0.0
  %680 = vmatpush1.msra.mxu0 0.0
  %681 = vmatprep.subr.mxu0 0.0
  %682 = vmatpush1.msra.mxu0 0.0
  %683 = vmatprep.subr.mxu0 0.0
  %684 = vmatpush1.msra.mxu0 0.0
  %685 = vmatprep.subr.mxu0 0.0
  %686 = vmatpush1.msra.mxu0 0.0
  %687 = vmatprep.subr.mxu0 0.0
  %688 = vmatpush1.msra.mxu0 0.0
  %689 = vmatprep.subr.mxu0 0.0
  %690 = vmatpush1.msra.mxu0 0.0
  %691 = vmatprep.subr.mxu0 0.0
  %692 = vmatpush1.msra.mxu0 0.0
  %693 = vmatprep.subr.mxu0 0.0
  %694 = vmatpush1.msra.mxu0 0.0
  %695 = vmatprep.subr.mxu0 0.0
  %696 = vmatpush1.msra.mxu0 0.0
  %697 = vmatprep.subr.mxu0 0.0
  %698 = vmatpush1.msra.mxu0 0.0
  %699 = vmatprep.subr.mxu0 0.0
  %700 = vmatpush1.msra.mxu0 0.0
  %701 = vmatprep.subr.mxu0 0.0
  %702 = vmatpush1.msra.mxu0 0.0
  %703 = vmatprep.subr.mxu0 0.0
  %704 = vmatpush1.msra.mxu0 0.0
  %705 = vmatprep.subr.mxu0 0.0
  %706 = vmatpush1.msra.mxu0 0.0
  %707 = vmatprep.subr.mxu0 0.0
  %708 = vmatpush1.msra.mxu0 0.0
  %709 = vmatprep.subr.mxu0 0.0
  %710 = vmatpush1.msra.mxu0 0.0
  %711 = vmatprep.subr.mxu0 0.0
  %712 = vmatpush1.msra.mxu0 0.0
  %713 = vmatprep.subr.mxu0 0.0
  %714 = vmatpush1.msra.mxu0 0.0
  %715 = vmatprep.subr.mxu0 0.0
  %716 = vmatpush1.msra.mxu0 0.0
  %717 = vmatprep.subr.mxu0 0.0
  %718 = vmatpush1.msra.mxu0 0.0
  %719 = vmatprep.subr.mxu0 0.0
  %720 = vmatpush1.msra.mxu0 0.0
  %721 = vmatprep.subr.mxu0 0.0
  %722 = vmatpush1.msra.mxu0 0.0
  %723 = vmatprep.subr.mxu0 0.0
  %724 = vmatpush1.msra.mxu0 0.0
  %725 = vmatprep.subr.mxu0 0.0
  %726 = vmatpush1.msra.mxu0 0.0
  %727 = vmatprep.subr.mxu0 0.0
  %728 = vmatpush1.msra.mxu0 0.0
  %729 = vmatprep.subr.mxu0 0.0
  %730 = vmatpush1.msra.mxu0 0.0
  %731 = vmatprep.subr.mxu0 0.0
  %732 = vmatpush1.msra.mxu0 0.0
  %733 = vmatprep.subr.mxu0 0.0
  %734 = vmatpush1.msra.mxu0 0.0
  %735 = vmatprep.subr.mxu0 0.0
  %736 = vmatpush1.msra.mxu0 0.0
  %737 = vmatprep.subr.mxu0 0.0
  %738 = vmatpush1.msra.mxu0 0.0
  %739 = vmatprep.mubr.f32.mxu0 0.0
  %740 = vmatmul.mubr.f32.gmra.mrb[0].mxu0 %v664
  %v741 = vpop.f32.mrb[0].mxu0
  %v742 = vadd.f32 %v652, %v741
  %v743 = vpop.f32.mrb[0].mxu0
  %744 = vmatprep.mubr.f32.mxu0 0.0
  %745 = vmatmul.mubr.f32.gmra.mrb[0].mxu0 %v667
  %v746 = vpop.f32.mrb[0].mxu0
  %v747 = vadd.f32 %v654, %v746
  %v748 = vpop.f32.mrb[0].mxu0
  %749 = vmatprep.mubr.f32.mxu0 0.0
  %750 = vmatmul.mubr.f32.gmra.mrb[0].mxu0 %v670
  %v751 = vpop.f32.mrb[0].mxu0
  %v752 = vadd.f32 %v656, %v751
  %v753 = vpop.f32.mrb[0].mxu0
  %754 = vmatprep.mubr.f32.mxu0 0.0
  %755 = vmatmul.mubr.f32.gmra.mrb[0].mxu0 %v673
  %v756 = vpop.f32.mrb[0].mxu0
  %v757 = vadd.f32 %v658, %v756
  %v758 = vpop.f32.mrb[0].mxu0
  %759 = vdwg.mxu0
  %v760 = vxor.u32 %v742, 2147483648
  %v761 = vxor.u32 %v747, 2147483648
  %v762 = vxor.u32 %v752, 2147483648
  %v763 = vxor.u32 %v757, 2147483648
  %v764 = vmul.f32 %v760, 1.442695
  %v765 = vpow.pop %v764
  %v766 = vmul.f32 %v761, 1.442695
  %v767 = vpow.pop %v766
  %v768 = vmul.f32 %v762, 1.442695
  %v769 = vpow.pop %v768
  %v770 = vmul.f32 %v763, 1.442695
  %v771 = vpow.pop %v770
  %v772 = vadd.f32 %v765, 1.0
  %v773 = vadd.f32 %v767, 1.0
  %v774 = vadd.f32 %v769, 1.0
  %v775 = vadd.f32 %v771, 1.0
  %v776 = vrcp.pop %v772
  %v777 = vmul.f32 1.0, %v776
  %v778 = vrcp.pop %v773
  %v779 = vmul.f32 1.0, %v778
  %v780 = vrcp.pop %v774
  %v781 = vmul.f32 1.0, %v780
  %v782 = vrcp.pop %v775
  %v783 = vmul.f32 1.0, %v782
  %v784 = vtanh.pop %v742
  %v785 = vtanh.pop %v747
  %v786 = vtanh.pop %v752
  %v787 = vtanh.pop %v757
  %792 = vrot.lane.b32.xlu0 %v784, 120
  %v793 = vpop.permute.xlu0 %792
  %794 = vrot.lane.b32.xlu0 %v785, 120
  %v795 = vpop.permute.xlu0 %794
  %796 = vrot.lane.b32.xlu0 %v786, 120
  %v797 = vpop.permute.xlu0 %796
  %798 = vrot.lane.b32.xlu0 %v787, 120
  %v799 = vpop.permute.xlu0 %798
  %v804 = vmul.f32 %v777, %v793
  %v805 = vmul.f32 %v779, %v795
  %v806 = vmul.f32 %v781, %v797
  %v807 = vmul.f32 %v783, %v799
  %v808 = vld [vmem:[%s1 + $0x60] sm:$0xff]
  %v809 = vld [vmem:[%s1 + $0x9a] sm:$0x1]
  %v810 = vlaneseq
  %v811 = vshrl.u32 %v810, 7
  %v812 = vsub.s32 0, %v811
  %v813 = vrot.slane %v809, %v812
  %v815 = vsel %vm186, %v804, 0
  %v818 = vsel %vm186, %v805, 0
  %v821 = vsel %vm186, %v806, 0
  %v824 = vsel %vm186, %v807, 0
  %826 = vmatprep.subr.mxu0 0.0
  %827 = vmatpush1.msra.mxu0 %v808
  %828 = vmatprep.subr.mxu0 0.0
  %829 = vmatpush1.msra.mxu0 0.0
  %830 = vmatprep.subr.mxu0 0.0
  %831 = vmatpush1.msra.mxu0 0.0
  %832 = vmatprep.subr.mxu0 0.0
  %833 = vmatpush1.msra.mxu0 0.0
  %834 = vmatprep.subr.mxu0 0.0
  %835 = vmatpush1.msra.mxu0 0.0
  %836 = vmatprep.subr.mxu0 0.0
  %837 = vmatpush1.msra.mxu0 0.0
  %838 = vmatprep.subr.mxu0 0.0
  %839 = vmatpush1.msra.mxu0 0.0
  %840 = vmatprep.subr.mxu0 0.0
  %841 = vmatpush1.msra.mxu0 0.0
  %842 = vmatprep.subr.mxu0 0.0
  %843 = vmatpush1.msra.mxu0 0.0
  %844 = vmatprep.subr.mxu0 0.0
  %845 = vmatpush1.msra.mxu0 0.0
  %846 = vmatprep.subr.mxu0 0.0
  %847 = vmatpush1.msra.mxu0 0.0
  %848 = vmatprep.subr.mxu0 0.0
  %849 = vmatpush1.msra.mxu0 0.0
  %850 = vmatprep.subr.mxu0 0.0
  %851 = vmatpush1.msra.mxu0 0.0
  %852 = vmatprep.subr.mxu0 0.0
  %853 = vmatpush1.msra.mxu0 0.0
  %854 = vmatprep.subr.mxu0 0.0
  %855 = vmatpush1.msra.mxu0 0.0
  %856 = vmatprep.subr.mxu0 0.0
  %857 = vmatpush1.msra.mxu0 0.0
  %858 = vmatprep.subr.mxu0 0.0
  %859 = vmatpush1.msra.mxu0 0.0
  %860 = vmatprep.subr.mxu0 0.0
  %861 = vmatpush1.msra.mxu0 0.0
  %862 = vmatprep.subr.mxu0 0.0
  %863 = vmatpush1.msra.mxu0 0.0
  %864 = vmatprep.subr.mxu0 0.0
  %865 = vmatpush1.msra.mxu0 0.0
  %866 = vmatprep.subr.mxu0 0.0
  %867 = vmatpush1.msra.mxu0 0.0
  %868 = vmatprep.subr.mxu0 0.0
  %869 = vmatpush1.msra.mxu0 0.0
  %870 = vmatprep.subr.mxu0 0.0
  %871 = vmatpush1.msra.mxu0 0.0
  %872 = vmatprep.subr.mxu0 0.0
  %873 = vmatpush1.msra.mxu0 0.0
  %874 = vmatprep.subr.mxu0 0.0
  %875 = vmatpush1.msra.mxu0 0.0
  %876 = vmatprep.subr.mxu0 0.0
  %877 = vmatpush1.msra.mxu0 0.0
  %878 = vmatprep.subr.mxu0 0.0
  %879 = vmatpush1.msra.mxu0 0.0
  %880 = vmatprep.subr.mxu0 0.0
  %881 = vmatpush1.msra.mxu0 0.0
  %882 = vmatprep.subr.mxu0 0.0
  %883 = vmatpush1.msra.mxu0 0.0
  %884 = vmatprep.subr.mxu0 0.0
  %885 = vmatpush1.msra.mxu0 0.0
  %886 = vmatprep.subr.mxu0 0.0
  %887 = vmatpush1.msra.mxu0 0.0
  %888 = vmatprep.subr.mxu0 0.0
  %889 = vmatpush1.msra.mxu0 0.0
  %890 = vmatprep.mubr.f32.mxu0 0.0
  %891 = vmatmul.mubr.f32.gmra.mrb[0].mxu0 %v815
  %v892 = vpop.f32.mrb[0].mxu0
  %v893 = vadd.f32 %v813, %v892
  %v894 = vpop.f32.mrb[0].mxu0
  %895 = vmatprep.mubr.f32.mxu0 0.0
  %896 = vmatmul.mubr.f32.gmra.mrb[0].mxu0 %v818
  %v897 = vpop.f32.mrb[0].mxu0
  %v898 = vadd.f32 %v813, %v897
  %v899 = vpop.f32.mrb[0].mxu0
  %900 = vmatprep.mubr.f32.mxu0 0.0
  %901 = vmatmul.mubr.f32.gmra.mrb[0].mxu0 %v821
  %v902 = vpop.f32.mrb[0].mxu0
  %v903 = vadd.f32 %v813, %v902
  %v904 = vpop.f32.mrb[0].mxu0
  %905 = vmatprep.mubr.f32.mxu0 0.0
  %906 = vmatmul.mubr.f32.gmra.mrb[0].mxu0 %v824
  %v907 = vpop.f32.mrb[0].mxu0
  %v908 = vadd.f32 %v813, %v907
  %v909 = vpop.f32.mrb[0].mxu0
  %910 = vdwg.mxu0
  %v911 = vadd.f32 %v584, %v893
  %v912 = vadd.f32 %v585, %v898
  %v913 = vadd.f32 %v586, %v903
  %v914 = vadd.f32 %v587, %v908
  %919 = vrot.lane.b32.xlu0 %v893, 120
  %v920 = vpop.permute.xlu0 %919
  %921 = vrot.lane.b32.xlu0 %v898, 120
  %v922 = vpop.permute.xlu0 %921
  %923 = vrot.lane.b32.xlu0 %v903, 120
  %v924 = vpop.permute.xlu0 %923
  %925 = vrot.lane.b32.xlu0 %v908, 120
  %v926 = vpop.permute.xlu0 %925
  %v931 = vadd.f32 %v604, %v920
  %v932 = vadd.f32 %v605, %v922
  %v933 = vadd.f32 %v606, %v924
  %v934 = vadd.f32 %v607, %v926
  %v935 = vrot.slane %v911, 7
  %v936 = vrot.slane %v912, 7
  %v937 = vrot.slane %v913, 7
  %v938 = vrot.slane %v914, 7
  %v939 = vsel %vm288, %v937, %v938
  %v940 = vsel %vm288, %v936, %v937
  %v941 = vsel %vm288, %v935, %v936
  %v942 = vsel %vm288, %v938, %v935
  %v943 = vsel %vm297, %v942, 0.0
  %v944 = vsel %vm298, %v941, 0.0
  %v945 = vsel %vm299, %v940, 0.0
  %v946 = vsel %vm300, %v939, 0.0
  %951 = vrot.lane.b32.xlu0 %v911, 8
  %v952 = vpop.permute.xlu0 %951
  %953 = vrot.lane.b32.xlu0 %v912, 8
  %v954 = vpop.permute.xlu0 %953
  %955 = vrot.lane.b32.xlu0 %v913, 8
  %v956 = vpop.permute.xlu0 %955
  %957 = vrot.lane.b32.xlu0 %v914, 8
  %v958 = vpop.permute.xlu0 %957
  %v963 = vsel %vm186, %v943, %v952
  %v964 = vsel %vm186, %v944, %v954
  %v965 = vsel %vm186, %v945, %v956
  %v966 = vsel %vm186, %v946, %v958
  %v967 = vld [vmem:[%s1 + $0x38] sm:$0xff]
  %v968 = vld [vmem:[%s1 + $0x40] sm:$0xff]
  %969 = vrot.lane.b32.xlu0 %v162, 88
  %v970 = vpop.permute.xlu0 %969
  %971 = vrot.lane.b32.xlu0 %v167, 88
  %v972 = vpop.permute.xlu0 %971
  %973 = vrot.lane.b32.xlu0 %v172, 88
  %v974 = vpop.permute.xlu0 %973
  %975 = vrot.lane.b32.xlu0 %v177, 88
  %v976 = vpop.permute.xlu0 %975
  %v982 = vsel %vm335, %v963, 0
  %v985 = vsel %vm335, %v964, 0
  %v988 = vsel %vm335, %v965, 0
  %v991 = vsel %vm335, %v966, 0
  %993 = vmatprep.subr.mxu0 0.0
  %994 = vmatpush1.msra.mxu0 %v967
  %995 = vmatprep.subr.mxu0 0.0
  %996 = vmatpush1.msra.mxu0 %v968
  %997 = vmatprep.subr.mxu0 0.0
  %998 = vmatpush1.msra.mxu0 0.0
  %999 = vmatprep.subr.mxu0 0.0
  %1000 = vmatpush1.msra.mxu0 0.0
  %1001 = vmatprep.subr.mxu0 0.0
  %1002 = vmatpush1.msra.mxu0 0.0
  %1003 = vmatprep.subr.mxu0 0.0
  %1004 = vmatpush1.msra.mxu0 0.0
  %1005 = vmatprep.subr.mxu0 0.0
  %1006 = vmatpush1.msra.mxu0 0.0
  %1007 = vmatprep.subr.mxu0 0.0
  %1008 = vmatpush1.msra.mxu0 0.0
  %1009 = vmatprep.subr.mxu0 0.0
  %1010 = vmatpush1.msra.mxu0 0.0
  %1011 = vmatprep.subr.mxu0 0.0
  %1012 = vmatpush1.msra.mxu0 0.0
  %1013 = vmatprep.subr.mxu0 0.0
  %1014 = vmatpush1.msra.mxu0 0.0
  %1015 = vmatprep.subr.mxu0 0.0
  %1016 = vmatpush1.msra.mxu0 0.0
  %1017 = vmatprep.subr.mxu0 0.0
  %1018 = vmatpush1.msra.mxu0 0.0
  %1019 = vmatprep.subr.mxu0 0.0
  %1020 = vmatpush1.msra.mxu0 0.0
  %1021 = vmatprep.subr.mxu0 0.0
  %1022 = vmatpush1.msra.mxu0 0.0
  %1023 = vmatprep.subr.mxu0 0.0
  %1024 = vmatpush1.msra.mxu0 0.0
  %1025 = vmatprep.subr.mxu0 0.0
  %1026 = vmatpush1.msra.mxu0 0.0
  %1027 = vmatprep.subr.mxu0 0.0
  %1028 = vmatpush1.msra.mxu0 0.0
  %1029 = vmatprep.subr.mxu0 0.0
  %1030 = vmatpush1.msra.mxu0 0.0
  %1031 = vmatprep.subr.mxu0 0.0
  %1032 = vmatpush1.msra.mxu0 0.0
  %1033 = vmatprep.subr.mxu0 0.0
  %1034 = vmatpush1.msra.mxu0 0.0
  %1035 = vmatprep.subr.mxu0 0.0
  %1036 = vmatpush1.msra.mxu0 0.0
  %1037 = vmatprep.subr.mxu0 0.0
  %1038 = vmatpush1.msra.mxu0 0.0
  %1039 = vmatprep.subr.mxu0 0.0
  %1040 = vmatpush1.msra.mxu0 0.0
  %1041 = vmatprep.subr.mxu0 0.0
  %1042 = vmatpush1.msra.mxu0 0.0
  %1043 = vmatprep.subr.mxu0 0.0
  %1044 = vmatpush1.msra.mxu0 0.0
  %1045 = vmatprep.subr.mxu0 0.0
  %1046 = vmatpush1.msra.mxu0 0.0
  %1047 = vmatprep.subr.mxu0 0.0
  %1048 = vmatpush1.msra.mxu0 0.0
  %1049 = vmatprep.subr.mxu0 0.0
  %1050 = vmatpush1.msra.mxu0 0.0
  %1051 = vmatprep.subr.mxu0 0.0
  %1052 = vmatpush1.msra.mxu0 0.0
  %1053 = vmatprep.subr.mxu0 0.0
  %1054 = vmatpush1.msra.mxu0 0.0
  %1055 = vmatprep.subr.mxu0 0.0
  %1056 = vmatpush1.msra.mxu0 0.0
  %1057 = vmatprep.mubr.f32.mxu0 0.0
  %1058 = vmatmul.mubr.f32.gmra.mrb[0].mxu0 %v982
  %v1059 = vpop.f32.mrb[0].mxu0
  %v1060 = vadd.f32 %v970, %v1059
  %v1061 = vpop.f32.mrb[0].mxu0
  %1062 = vmatprep.mubr.f32.mxu0 0.0
  %1063 = vmatmul.mubr.f32.gmra.mrb[0].mxu0 %v985
  %v1064 = vpop.f32.mrb[0].mxu0
  %v1065 = vadd.f32 %v972, %v1064
  %v1066 = vpop.f32.mrb[0].mxu0
  %1067 = vmatprep.mubr.f32.mxu0 0.0
  %1068 = vmatmul.mubr.f32.gmra.mrb[0].mxu0 %v988
  %v1069 = vpop.f32.mrb[0].mxu0
  %v1070 = vadd.f32 %v974, %v1069
  %v1071 = vpop.f32.mrb[0].mxu0
  %1072 = vmatprep.mubr.f32.mxu0 0.0
  %1073 = vmatmul.mubr.f32.gmra.mrb[0].mxu0 %v991
  %v1074 = vpop.f32.mrb[0].mxu0
  %v1075 = vadd.f32 %v976, %v1074
  %v1076 = vpop.f32.mrb[0].mxu0
  %1077 = vdwg.mxu0
  %v1078 = vxor.u32 %v1060, 2147483648
  %v1079 = vxor.u32 %v1065, 2147483648
  %v1080 = vxor.u32 %v1070, 2147483648
  %v1081 = vxor.u32 %v1075, 2147483648
  %v1082 = vmul.f32 %v1078, 1.442695
  %v1083 = vpow.pop %v1082
  %v1084 = vmul.f32 %v1079, 1.442695
  %v1085 = vpow.pop %v1084
  %v1086 = vmul.f32 %v1080, 1.442695
  %v1087 = vpow.pop %v1086
  %v1088 = vmul.f32 %v1081, 1.442695
  %v1089 = vpow.pop %v1088
  %v1090 = vadd.f32 %v1083, 1.0
  %v1091 = vadd.f32 %v1085, 1.0
  %v1092 = vadd.f32 %v1087, 1.0
  %v1093 = vadd.f32 %v1089, 1.0
  %v1094 = vrcp.pop %v1090
  %v1095 = vmul.f32 1.0, %v1094
  %v1096 = vrcp.pop %v1091
  %v1097 = vmul.f32 1.0, %v1096
  %v1098 = vrcp.pop %v1092
  %v1099 = vmul.f32 1.0, %v1098
  %v1100 = vrcp.pop %v1093
  %v1101 = vmul.f32 1.0, %v1100
  %v1102 = vtanh.pop %v1060
  %v1103 = vtanh.pop %v1065
  %v1104 = vtanh.pop %v1070
  %v1105 = vtanh.pop %v1075
  %1110 = vrot.lane.b32.xlu0 %v1102, 120
  %v1111 = vpop.permute.xlu0 %1110
  %1112 = vrot.lane.b32.xlu0 %v1103, 120
  %v1113 = vpop.permute.xlu0 %1112
  %1114 = vrot.lane.b32.xlu0 %v1104, 120
  %v1115 = vpop.permute.xlu0 %1114
  %1116 = vrot.lane.b32.xlu0 %v1105, 120
  %v1117 = vpop.permute.xlu0 %1116
  %v1122 = vmul.f32 %v1095, %v1111
  %v1123 = vmul.f32 %v1097, %v1113
  %v1124 = vmul.f32 %v1099, %v1115
  %v1125 = vmul.f32 %v1101, %v1117
  %v1126 = vld [vmem:[%s1 + $0x68] sm:$0xff]
  %v1127 = vld [vmem:[%s1 + $0x9b] sm:$0x1]
  %v1128 = vlaneseq
  %v1129 = vshrl.u32 %v1128, 7
  %v1130 = vsub.s32 0, %v1129
  %v1131 = vrot.slane %v1127, %v1130
  %v1133 = vsel %vm186, %v1122, 0
  %v1136 = vsel %vm186, %v1123, 0
  %v1139 = vsel %vm186, %v1124, 0
  %v1142 = vsel %vm186, %v1125, 0
  %1144 = vmatprep.subr.mxu0 0.0
  %1145 = vmatpush1.msra.mxu0 %v1126
  %1146 = vmatprep.subr.mxu0 0.0
  %1147 = vmatpush1.msra.mxu0 0.0
  %1148 = vmatprep.subr.mxu0 0.0
  %1149 = vmatpush1.msra.mxu0 0.0
  %1150 = vmatprep.subr.mxu0 0.0
  %1151 = vmatpush1.msra.mxu0 0.0
  %1152 = vmatprep.subr.mxu0 0.0
  %1153 = vmatpush1.msra.mxu0 0.0
  %1154 = vmatprep.subr.mxu0 0.0
  %1155 = vmatpush1.msra.mxu0 0.0
  %1156 = vmatprep.subr.mxu0 0.0
  %1157 = vmatpush1.msra.mxu0 0.0
  %1158 = vmatprep.subr.mxu0 0.0
  %1159 = vmatpush1.msra.mxu0 0.0
  %1160 = vmatprep.subr.mxu0 0.0
  %1161 = vmatpush1.msra.mxu0 0.0
  %1162 = vmatprep.subr.mxu0 0.0
  %1163 = vmatpush1.msra.mxu0 0.0
  %1164 = vmatprep.subr.mxu0 0.0
  %1165 = vmatpush1.msra.mxu0 0.0
  %1166 = vmatprep.subr.mxu0 0.0
  %1167 = vmatpush1.msra.mxu0 0.0
  %1168 = vmatprep.subr.mxu0 0.0
  %1169 = vmatpush1.msra.mxu0 0.0
  %1170 = vmatprep.subr.mxu0 0.0
  %1171 = vmatpush1.msra.mxu0 0.0
  %1172 = vmatprep.subr.mxu0 0.0
  %1173 = vmatpush1.msra.mxu0 0.0
  %1174 = vmatprep.subr.mxu0 0.0
  %1175 = vmatpush1.msra.mxu0 0.0
  %1176 = vmatprep.subr.mxu0 0.0
  %1177 = vmatpush1.msra.mxu0 0.0
  %1178 = vmatprep.subr.mxu0 0.0
  %1179 = vmatpush1.msra.mxu0 0.0
  %1180 = vmatprep.subr.mxu0 0.0
  %1181 = vmatpush1.msra.mxu0 0.0
  %1182 = vmatprep.subr.mxu0 0.0
  %1183 = vmatpush1.msra.mxu0 0.0
  %1184 = vmatprep.subr.mxu0 0.0
  %1185 = vmatpush1.msra.mxu0 0.0
  %1186 = vmatprep.subr.mxu0 0.0
  %1187 = vmatpush1.msra.mxu0 0.0
  %1188 = vmatprep.subr.mxu0 0.0
  %1189 = vmatpush1.msra.mxu0 0.0
  %1190 = vmatprep.subr.mxu0 0.0
  %1191 = vmatpush1.msra.mxu0 0.0
  %1192 = vmatprep.subr.mxu0 0.0
  %1193 = vmatpush1.msra.mxu0 0.0
  %1194 = vmatprep.subr.mxu0 0.0
  %1195 = vmatpush1.msra.mxu0 0.0
  %1196 = vmatprep.subr.mxu0 0.0
  %1197 = vmatpush1.msra.mxu0 0.0
  %1198 = vmatprep.subr.mxu0 0.0
  %1199 = vmatpush1.msra.mxu0 0.0
  %1200 = vmatprep.subr.mxu0 0.0
  %1201 = vmatpush1.msra.mxu0 0.0
  %1202 = vmatprep.subr.mxu0 0.0
  %1203 = vmatpush1.msra.mxu0 0.0
  %1204 = vmatprep.subr.mxu0 0.0
  %1205 = vmatpush1.msra.mxu0 0.0
  %1206 = vmatprep.subr.mxu0 0.0
  %1207 = vmatpush1.msra.mxu0 0.0
  %1208 = vmatprep.mubr.f32.mxu0 0.0
  %1209 = vmatmul.mubr.f32.gmra.mrb[0].mxu0 %v1133
  %v1210 = vpop.f32.mrb[0].mxu0
  %v1211 = vadd.f32 %v1131, %v1210
  %v1212 = vpop.f32.mrb[0].mxu0
  %1213 = vmatprep.mubr.f32.mxu0 0.0
  %1214 = vmatmul.mubr.f32.gmra.mrb[0].mxu0 %v1136
  %v1215 = vpop.f32.mrb[0].mxu0
  %v1216 = vadd.f32 %v1131, %v1215
  %v1217 = vpop.f32.mrb[0].mxu0
  %1218 = vmatprep.mubr.f32.mxu0 0.0
  %1219 = vmatmul.mubr.f32.gmra.mrb[0].mxu0 %v1139
  %v1220 = vpop.f32.mrb[0].mxu0
  %v1221 = vadd.f32 %v1131, %v1220
  %v1222 = vpop.f32.mrb[0].mxu0
  %1223 = vmatprep.mubr.f32.mxu0 0.0
  %1224 = vmatmul.mubr.f32.gmra.mrb[0].mxu0 %v1142
  %v1225 = vpop.f32.mrb[0].mxu0
  %v1226 = vadd.f32 %v1131, %v1225
  %v1227 = vpop.f32.mrb[0].mxu0
  %1228 = vdwg.mxu0
  %v1229 = vadd.f32 %v911, %v1211
  %v1230 = vadd.f32 %v912, %v1216
  %v1231 = vadd.f32 %v913, %v1221
  %v1232 = vadd.f32 %v914, %v1226
  %1237 = vrot.lane.b32.xlu0 %v1211, 120
  %v1238 = vpop.permute.xlu0 %1237
  %1239 = vrot.lane.b32.xlu0 %v1216, 120
  %v1240 = vpop.permute.xlu0 %1239
  %1241 = vrot.lane.b32.xlu0 %v1221, 120
  %v1242 = vpop.permute.xlu0 %1241
  %1243 = vrot.lane.b32.xlu0 %v1226, 120
  %v1244 = vpop.permute.xlu0 %1243
  %v1249 = vadd.f32 %v931, %v1238
  %v1250 = vadd.f32 %v932, %v1240
  %v1251 = vadd.f32 %v933, %v1242
  %v1252 = vadd.f32 %v934, %v1244
  %v1253 = vrot.slane %v1229, 6
  %v1254 = vrot.slane %v1230, 6
  %v1255 = vrot.slane %v1231, 6
  %v1256 = vrot.slane %v1232, 6
  %v1257 = vsel %vm612, %v1255, %v1256
  %v1258 = vsel %vm612, %v1254, %v1255
  %v1259 = vsel %vm612, %v1253, %v1254
  %v1260 = vsel %vm612, %v1256, %v1253
  %v1261 = vsel %vm621, %v1260, 0.0
  %v1262 = vsel %vm622, %v1259, 0.0
  %v1263 = vsel %vm623, %v1258, 0.0
  %v1264 = vsel %vm624, %v1257, 0.0
  %1269 = vrot.lane.b32.xlu0 %v1229, 8
  %v1270 = vpop.permute.xlu0 %1269
  %1271 = vrot.lane.b32.xlu0 %v1230, 8
  %v1272 = vpop.permute.xlu0 %1271
  %1273 = vrot.lane.b32.xlu0 %v1231, 8
  %v1274 = vpop.permute.xlu0 %1273
  %1275 = vrot.lane.b32.xlu0 %v1232, 8
  %v1276 = vpop.permute.xlu0 %1275
  %v1281 = vsel %vm186, %v1261, %v1270
  %v1282 = vsel %vm186, %v1262, %v1272
  %v1283 = vsel %vm186, %v1263, %v1274
  %v1284 = vsel %vm186, %v1264, %v1276
  %v1285 = vld [vmem:[%s1 + $0x48] sm:$0xff]
  %v1286 = vld [vmem:[%s1 + $0x50] sm:$0xff]
  %1287 = vrot.lane.b32.xlu0 %v162, 72
  %v1288 = vpop.permute.xlu0 %1287
  %1289 = vrot.lane.b32.xlu0 %v167, 72
  %v1290 = vpop.permute.xlu0 %1289
  %1291 = vrot.lane.b32.xlu0 %v172, 72
  %v1292 = vpop.permute.xlu0 %1291
  %1293 = vrot.lane.b32.xlu0 %v177, 72
  %v1294 = vpop.permute.xlu0 %1293
  %v1300 = vsel %vm335, %v1281, 0
  %v1303 = vsel %vm335, %v1282, 0
  %v1306 = vsel %vm335, %v1283, 0
  %v1309 = vsel %vm335, %v1284, 0
  %1311 = vmatprep.subr.mxu0 0.0
  %1312 = vmatpush1.msra.mxu0 %v1285
  %1313 = vmatprep.subr.mxu0 0.0
  %1314 = vmatpush1.msra.mxu0 %v1286
  %1315 = vmatprep.subr.mxu0 0.0
  %1316 = vmatpush1.msra.mxu0 0.0
  %1317 = vmatprep.subr.mxu0 0.0
  %1318 = vmatpush1.msra.mxu0 0.0
  %1319 = vmatprep.subr.mxu0 0.0
  %1320 = vmatpush1.msra.mxu0 0.0
  %1321 = vmatprep.subr.mxu0 0.0
  %1322 = vmatpush1.msra.mxu0 0.0
  %1323 = vmatprep.subr.mxu0 0.0
  %1324 = vmatpush1.msra.mxu0 0.0
  %1325 = vmatprep.subr.mxu0 0.0
  %1326 = vmatpush1.msra.mxu0 0.0
  %1327 = vmatprep.subr.mxu0 0.0
  %1328 = vmatpush1.msra.mxu0 0.0
  %1329 = vmatprep.subr.mxu0 0.0
  %1330 = vmatpush1.msra.mxu0 0.0
  %1331 = vmatprep.subr.mxu0 0.0
  %1332 = vmatpush1.msra.mxu0 0.0
  %1333 = vmatprep.subr.mxu0 0.0
  %1334 = vmatpush1.msra.mxu0 0.0
  %1335 = vmatprep.subr.mxu0 0.0
  %1336 = vmatpush1.msra.mxu0 0.0
  %1337 = vmatprep.subr.mxu0 0.0
  %1338 = vmatpush1.msra.mxu0 0.0
  %1339 = vmatprep.subr.mxu0 0.0
  %1340 = vmatpush1.msra.mxu0 0.0
  %1341 = vmatprep.subr.mxu0 0.0
  %1342 = vmatpush1.msra.mxu0 0.0
  %1343 = vmatprep.subr.mxu0 0.0
  %1344 = vmatpush1.msra.mxu0 0.0
  %1345 = vmatprep.subr.mxu0 0.0
  %1346 = vmatpush1.msra.mxu0 0.0
  %1347 = vmatprep.subr.mxu0 0.0
  %1348 = vmatpush1.msra.mxu0 0.0
  %1349 = vmatprep.subr.mxu0 0.0
  %1350 = vmatpush1.msra.mxu0 0.0
  %1351 = vmatprep.subr.mxu0 0.0
  %1352 = vmatpush1.msra.mxu0 0.0
  %1353 = vmatprep.subr.mxu0 0.0
  %1354 = vmatpush1.msra.mxu0 0.0
  %1355 = vmatprep.subr.mxu0 0.0
  %1356 = vmatpush1.msra.mxu0 0.0
  %1357 = vmatprep.subr.mxu0 0.0
  %1358 = vmatpush1.msra.mxu0 0.0
  %1359 = vmatprep.subr.mxu0 0.0
  %1360 = vmatpush1.msra.mxu0 0.0
  %1361 = vmatprep.subr.mxu0 0.0
  %1362 = vmatpush1.msra.mxu0 0.0
  %1363 = vmatprep.subr.mxu0 0.0
  %1364 = vmatpush1.msra.mxu0 0.0
  %1365 = vmatprep.subr.mxu0 0.0
  %1366 = vmatpush1.msra.mxu0 0.0
  %1367 = vmatprep.subr.mxu0 0.0
  %1368 = vmatpush1.msra.mxu0 0.0
  %1369 = vmatprep.subr.mxu0 0.0
  %1370 = vmatpush1.msra.mxu0 0.0
  %1371 = vmatprep.subr.mxu0 0.0
  %1372 = vmatpush1.msra.mxu0 0.0
  %1373 = vmatprep.subr.mxu0 0.0
  %1374 = vmatpush1.msra.mxu0 0.0
  %1375 = vmatprep.mubr.f32.mxu0 0.0
  %1376 = vmatmul.mubr.f32.gmra.mrb[0].mxu0 %v1300
  %v1377 = vpop.f32.mrb[0].mxu0
  %v1378 = vadd.f32 %v1288, %v1377
  %v1379 = vpop.f32.mrb[0].mxu0
  %1380 = vmatprep.mubr.f32.mxu0 0.0
  %1381 = vmatmul.mubr.f32.gmra.mrb[0].mxu0 %v1303
  %v1382 = vpop.f32.mrb[0].mxu0
  %v1383 = vadd.f32 %v1290, %v1382
  %v1384 = vpop.f32.mrb[0].mxu0
  %1385 = vmatprep.mubr.f32.mxu0 0.0
  %1386 = vmatmul.mubr.f32.gmra.mrb[0].mxu0 %v1306
  %v1387 = vpop.f32.mrb[0].mxu0
  %v1388 = vadd.f32 %v1292, %v1387
  %v1389 = vpop.f32.mrb[0].mxu0
  %1390 = vmatprep.mubr.f32.mxu0 0.0
  %1391 = vmatmul.mubr.f32.gmra.mrb[0].mxu0 %v1309
  %v1392 = vpop.f32.mrb[0].mxu0
  %v1393 = vadd.f32 %v1294, %v1392
  %v1394 = vpop.f32.mrb[0].mxu0
  %1395 = vdwg.mxu0
  %v1396 = vxor.u32 %v1378, 2147483648
  %v1397 = vxor.u32 %v1383, 2147483648
  %v1398 = vxor.u32 %v1388, 2147483648
  %v1399 = vxor.u32 %v1393, 2147483648
  %v1400 = vmul.f32 %v1396, 1.442695
  %v1401 = vpow.pop %v1400
  %v1402 = vmul.f32 %v1397, 1.442695
  %v1403 = vpow.pop %v1402
  %v1404 = vmul.f32 %v1398, 1.442695
  %v1405 = vpow.pop %v1404
  %v1406 = vmul.f32 %v1399, 1.442695
  %v1407 = vpow.pop %v1406
  %v1408 = vadd.f32 %v1401, 1.0
  %v1409 = vadd.f32 %v1403, 1.0
  %v1410 = vadd.f32 %v1405, 1.0
  %v1411 = vadd.f32 %v1407, 1.0
  %v1412 = vrcp.pop %v1408
  %v1413 = vmul.f32 1.0, %v1412
  %v1414 = vrcp.pop %v1409
  %v1415 = vmul.f32 1.0, %v1414
  %v1416 = vrcp.pop %v1410
  %v1417 = vmul.f32 1.0, %v1416
  %v1418 = vrcp.pop %v1411
  %v1419 = vmul.f32 1.0, %v1418
  %v1420 = vtanh.pop %v1378
  %v1421 = vtanh.pop %v1383
  %v1422 = vtanh.pop %v1388
  %v1423 = vtanh.pop %v1393
  %1428 = vrot.lane.b32.xlu0 %v1420, 120
  %v1429 = vpop.permute.xlu0 %1428
  %1430 = vrot.lane.b32.xlu0 %v1421, 120
  %v1431 = vpop.permute.xlu0 %1430
  %1432 = vrot.lane.b32.xlu0 %v1422, 120
  %v1433 = vpop.permute.xlu0 %1432
  %1434 = vrot.lane.b32.xlu0 %v1423, 120
  %v1435 = vpop.permute.xlu0 %1434
  %v1440 = vmul.f32 %v1413, %v1429
  %v1441 = vmul.f32 %v1415, %v1431
  %v1442 = vmul.f32 %v1417, %v1433
  %v1443 = vmul.f32 %v1419, %v1435
  %v1444 = vld [vmem:[%s1 + $0x70] sm:$0xff]
  %v1445 = vld [vmem:[%s1 + $0x9c] sm:$0x1]
  %v1446 = vlaneseq
  %v1447 = vshrl.u32 %v1446, 7
  %v1448 = vsub.s32 0, %v1447
  %v1449 = vrot.slane %v1445, %v1448
  %v1451 = vsel %vm186, %v1440, 0
  %v1454 = vsel %vm186, %v1441, 0
  %v1457 = vsel %vm186, %v1442, 0
  %v1460 = vsel %vm186, %v1443, 0
  %1462 = vmatprep.subr.mxu0 0.0
  %1463 = vmatpush1.msra.mxu0 %v1444
  %1464 = vmatprep.subr.mxu0 0.0
  %1465 = vmatpush1.msra.mxu0 0.0
  %1466 = vmatprep.subr.mxu0 0.0
  %1467 = vmatpush1.msra.mxu0 0.0
  %1468 = vmatprep.subr.mxu0 0.0
  %1469 = vmatpush1.msra.mxu0 0.0
  %1470 = vmatprep.subr.mxu0 0.0
  %1471 = vmatpush1.msra.mxu0 0.0
  %1472 = vmatprep.subr.mxu0 0.0
  %1473 = vmatpush1.msra.mxu0 0.0
  %1474 = vmatprep.subr.mxu0 0.0
  %1475 = vmatpush1.msra.mxu0 0.0
  %1476 = vmatprep.subr.mxu0 0.0
  %1477 = vmatpush1.msra.mxu0 0.0
  %1478 = vmatprep.subr.mxu0 0.0
  %1479 = vmatpush1.msra.mxu0 0.0
  %1480 = vmatprep.subr.mxu0 0.0
  %1481 = vmatpush1.msra.mxu0 0.0
  %1482 = vmatprep.subr.mxu0 0.0
  %1483 = vmatpush1.msra.mxu0 0.0
  %1484 = vmatprep.subr.mxu0 0.0
  %1485 = vmatpush1.msra.mxu0 0.0
  %1486 = vmatprep.subr.mxu0 0.0
  %1487 = vmatpush1.msra.mxu0 0.0
  %1488 = vmatprep.subr.mxu0 0.0
  %1489 = vmatpush1.msra.mxu0 0.0
  %1490 = vmatprep.subr.mxu0 0.0
  %1491 = vmatpush1.msra.mxu0 0.0
  %1492 = vmatprep.subr.mxu0 0.0
  %1493 = vmatpush1.msra.mxu0 0.0
  %1494 = vmatprep.subr.mxu0 0.0
  %1495 = vmatpush1.msra.mxu0 0.0
  %1496 = vmatprep.subr.mxu0 0.0
  %1497 = vmatpush1.msra.mxu0 0.0
  %1498 = vmatprep.subr.mxu0 0.0
  %1499 = vmatpush1.msra.mxu0 0.0
  %1500 = vmatprep.subr.mxu0 0.0
  %1501 = vmatpush1.msra.mxu0 0.0
  %1502 = vmatprep.subr.mxu0 0.0
  %1503 = vmatpush1.msra.mxu0 0.0
  %1504 = vmatprep.subr.mxu0 0.0
  %1505 = vmatpush1.msra.mxu0 0.0
  %1506 = vmatprep.subr.mxu0 0.0
  %1507 = vmatpush1.msra.mxu0 0.0
  %1508 = vmatprep.subr.mxu0 0.0
  %1509 = vmatpush1.msra.mxu0 0.0
  %1510 = vmatprep.subr.mxu0 0.0
  %1511 = vmatpush1.msra.mxu0 0.0
  %1512 = vmatprep.subr.mxu0 0.0
  %1513 = vmatpush1.msra.mxu0 0.0
  %1514 = vmatprep.subr.mxu0 0.0
  %1515 = vmatpush1.msra.mxu0 0.0
  %1516 = vmatprep.subr.mxu0 0.0
  %1517 = vmatpush1.msra.mxu0 0.0
  %1518 = vmatprep.subr.mxu0 0.0
  %1519 = vmatpush1.msra.mxu0 0.0
  %1520 = vmatprep.subr.mxu0 0.0
  %1521 = vmatpush1.msra.mxu0 0.0
  %1522 = vmatprep.subr.mxu0 0.0
  %1523 = vmatpush1.msra.mxu0 0.0
  %1524 = vmatprep.subr.mxu0 0.0
  %1525 = vmatpush1.msra.mxu0 0.0
  %1526 = vmatprep.mubr.f32.mxu0 0.0
  %1527 = vmatmul.mubr.f32.gmra.mrb[0].mxu0 %v1451
  %v1528 = vpop.f32.mrb[0].mxu0
  %v1529 = vadd.f32 %v1449, %v1528
  %v1530 = vpop.f32.mrb[0].mxu0
  %1531 = vmatprep.mubr.f32.mxu0 0.0
  %1532 = vmatmul.mubr.f32.gmra.mrb[0].mxu0 %v1454
  %v1533 = vpop.f32.mrb[0].mxu0
  %v1534 = vadd.f32 %v1449, %v1533
  %v1535 = vpop.f32.mrb[0].mxu0
  %1536 = vmatprep.mubr.f32.mxu0 0.0
  %1537 = vmatmul.mubr.f32.gmra.mrb[0].mxu0 %v1457
  %v1538 = vpop.f32.mrb[0].mxu0
  %v1539 = vadd.f32 %v1449, %v1538
  %v1540 = vpop.f32.mrb[0].mxu0
  %1541 = vmatprep.mubr.f32.mxu0 0.0
  %1542 = vmatmul.mubr.f32.gmra.mrb[0].mxu0 %v1460
  %v1543 = vpop.f32.mrb[0].mxu0
  %v1544 = vadd.f32 %v1449, %v1543
  %v1545 = vpop.f32.mrb[0].mxu0
  %1546 = vdwg.mxu0
  %1551 = vrot.lane.b32.xlu0 %v1529, 120
  %v1552 = vpop.permute.xlu0 %1551
  %1553 = vrot.lane.b32.xlu0 %v1534, 120
  %v1554 = vpop.permute.xlu0 %1553
  %1555 = vrot.lane.b32.xlu0 %v1539, 120
  %v1556 = vpop.permute.xlu0 %1555
  %1557 = vrot.lane.b32.xlu0 %v1544, 120
  %v1558 = vpop.permute.xlu0 %1557
  %v1563 = vadd.f32 %v1249, %v1552
  %v1564 = vadd.f32 %v1250, %v1554
  %v1565 = vadd.f32 %v1251, %v1556
  %v1566 = vadd.f32 %v1252, %v1558
  %v1567 = vmax.f32 %v1563, 0.0
  %v1568 = vmax.f32 %v1564, 0.0
  %v1569 = vmax.f32 %v1565, 0.0
  %v1570 = vmax.f32 %v1566, 0.0
  %v1571 = vld [vmem:[%s1 + $0x78] sm:$0xff]
  %v1572 = vld [vmem:[%s1 + $0x80] sm:$0xf]
  %1573 = vrot.lane.b32.xlu0 %v162, 56
  %v1574 = vpop.permute.xlu0 %1573
  %1575 = vrot.lane.b32.xlu0 %v167, 56
  %v1576 = vpop.permute.xlu0 %1575
  %1577 = vrot.lane.b32.xlu0 %v172, 56
  %v1578 = vpop.permute.xlu0 %1577
  %1579 = vrot.lane.b32.xlu0 %v177, 56
  %v1580 = vpop.permute.xlu0 %1579
  %vm1585 = vcmask 97280
  %v1587 = vsel %vm1585, %v1567, 0
  %v1590 = vsel %vm1585, %v1568, 0
  %v1593 = vsel %vm1585, %v1569, 0
  %v1596 = vsel %vm1585, %v1570, 0
  %vm1598 = vcmask 1043456
  %v1600 = vsel %vm1598, %v1572, 0
  %1602 = vmatprep.subr.mxu0 0.0
  %1603 = vmatpush1.msra.mxu0 %v1571
  %1604 = vmatprep.subr.mxu0 0.0
  %1605 = vmatpush1.msra.mxu0 %v1600
  %1606 = vmatprep.subr.mxu0 0.0
  %1607 = vmatpush1.msra.mxu0 0.0
  %1608 = vmatprep.subr.mxu0 0.0
  %1609 = vmatpush1.msra.mxu0 0.0
  %1610 = vmatprep.subr.mxu0 0.0
  %1611 = vmatpush1.msra.mxu0 0.0
  %1612 = vmatprep.subr.mxu0 0.0
  %1613 = vmatpush1.msra.mxu0 0.0
  %1614 = vmatprep.subr.mxu0 0.0
  %1615 = vmatpush1.msra.mxu0 0.0
  %1616 = vmatprep.subr.mxu0 0.0
  %1617 = vmatpush1.msra.mxu0 0.0
  %1618 = vmatprep.subr.mxu0 0.0
  %1619 = vmatpush1.msra.mxu0 0.0
  %1620 = vmatprep.subr.mxu0 0.0
  %1621 = vmatpush1.msra.mxu0 0.0
  %1622 = vmatprep.subr.mxu0 0.0
  %1623 = vmatpush1.msra.mxu0 0.0
  %1624 = vmatprep.subr.mxu0 0.0
  %1625 = vmatpush1.msra.mxu0 0.0
  %1626 = vmatprep.subr.mxu0 0.0
  %1627 = vmatpush1.msra.mxu0 0.0
  %1628 = vmatprep.subr.mxu0 0.0
  %1629 = vmatpush1.msra.mxu0 0.0
  %1630 = vmatprep.subr.mxu0 0.0
  %1631 = vmatpush1.msra.mxu0 0.0
  %1632 = vmatprep.subr.mxu0 0.0
  %1633 = vmatpush1.msra.mxu0 0.0
  %1634 = vmatprep.subr.mxu0 0.0
  %1635 = vmatpush1.msra.mxu0 0.0
  %1636 = vmatprep.subr.mxu0 0.0
  %1637 = vmatpush1.msra.mxu0 0.0
  %1638 = vmatprep.subr.mxu0 0.0
  %1639 = vmatpush1.msra.mxu0 0.0
  %1640 = vmatprep.subr.mxu0 0.0
  %1641 = vmatpush1.msra.mxu0 0.0
  %1642 = vmatprep.subr.mxu0 0.0
  %1643 = vmatpush1.msra.mxu0 0.0
  %1644 = vmatprep.subr.mxu0 0.0
  %1645 = vmatpush1.msra.mxu0 0.0
  %1646 = vmatprep.subr.mxu0 0.0
  %1647 = vmatpush1.msra.mxu0 0.0
  %1648 = vmatprep.subr.mxu0 0.0
  %1649 = vmatpush1.msra.mxu0 0.0
  %1650 = vmatprep.subr.mxu0 0.0
  %1651 = vmatpush1.msra.mxu0 0.0
  %1652 = vmatprep.subr.mxu0 0.0
  %1653 = vmatpush1.msra.mxu0 0.0
  %1654 = vmatprep.subr.mxu0 0.0
  %1655 = vmatpush1.msra.mxu0 0.0
  %1656 = vmatprep.subr.mxu0 0.0
  %1657 = vmatpush1.msra.mxu0 0.0
  %1658 = vmatprep.subr.mxu0 0.0
  %1659 = vmatpush1.msra.mxu0 0.0
  %1660 = vmatprep.subr.mxu0 0.0
  %1661 = vmatpush1.msra.mxu0 0.0
  %1662 = vmatprep.subr.mxu0 0.0
  %1663 = vmatpush1.msra.mxu0 0.0
  %1664 = vmatprep.subr.mxu0 0.0
  %1665 = vmatpush1.msra.mxu0 0.0
  %1666 = vmatprep.mubr.f32.mxu0 0.0
  %1667 = vmatmul.mubr.f32.gmra.mrb[0].mxu0 %v1587
  %v1668 = vpop.f32.mrb[0].mxu0
  %v1669 = vadd.f32 %v1574, %v1668
  %v1670 = vpop.f32.mrb[0].mxu0
  %1671 = vmatprep.mubr.f32.mxu0 0.0
  %1672 = vmatmul.mubr.f32.gmra.mrb[0].mxu0 %v1590
  %v1673 = vpop.f32.mrb[0].mxu0
  %v1674 = vadd.f32 %v1576, %v1673
  %v1675 = vpop.f32.mrb[0].mxu0
  %1676 = vmatprep.mubr.f32.mxu0 0.0
  %1677 = vmatmul.mubr.f32.gmra.mrb[0].mxu0 %v1593
  %v1678 = vpop.f32.mrb[0].mxu0
  %v1679 = vadd.f32 %v1578, %v1678
  %v1680 = vpop.f32.mrb[0].mxu0
  %1681 = vmatprep.mubr.f32.mxu0 0.0
  %1682 = vmatmul.mubr.f32.gmra.mrb[0].mxu0 %v1596
  %v1683 = vpop.f32.mrb[0].mxu0
  %v1684 = vadd.f32 %v1580, %v1683
  %v1685 = vpop.f32.mrb[0].mxu0
  %1686 = vdwg.mxu0
  %v1687 = vmax.f32 %v1669, 0.0
  %v1688 = vmax.f32 %v1674, 0.0
  %v1689 = vmax.f32 %v1679, 0.0
  %v1690 = vmax.f32 %v1684, 0.0
  %v1691 = vld [vmem:[%s1 + $0x88] sm:$0xff]
  %v1692 = vld [vmem:[%s1 + $0x90] sm:$0xf]
  %v1693 = vld [vmem:[%s1 + $0x9d] sm:$0x1]
  %v1694 = vlaneseq
  %v1695 = vshrl.u32 %v1694, 7
  %v1696 = vsub.s32 0, %v1695
  %v1697 = vrot.slane %v1693, %v1696
  %v1699 = vsel %vm1585, %v1687, 0
  %v1702 = vsel %vm1585, %v1688, 0
  %v1705 = vsel %vm1585, %v1689, 0
  %v1708 = vsel %vm1585, %v1690, 0
  %v1711 = vsel %vm1598, %v1692, 0
  %1713 = vmatprep.subr.mxu0 0.0
  %1714 = vmatpush1.msra.mxu0 %v1691
  %1715 = vmatprep.subr.mxu0 0.0
  %1716 = vmatpush1.msra.mxu0 %v1711
  %1717 = vmatprep.subr.mxu0 0.0
  %1718 = vmatpush1.msra.mxu0 0.0
  %1719 = vmatprep.subr.mxu0 0.0
  %1720 = vmatpush1.msra.mxu0 0.0
  %1721 = vmatprep.subr.mxu0 0.0
  %1722 = vmatpush1.msra.mxu0 0.0
  %1723 = vmatprep.subr.mxu0 0.0
  %1724 = vmatpush1.msra.mxu0 0.0
  %1725 = vmatprep.subr.mxu0 0.0
  %1726 = vmatpush1.msra.mxu0 0.0
  %1727 = vmatprep.subr.mxu0 0.0
  %1728 = vmatpush1.msra.mxu0 0.0
  %1729 = vmatprep.subr.mxu0 0.0
  %1730 = vmatpush1.msra.mxu0 0.0
  %1731 = vmatprep.subr.mxu0 0.0
  %1732 = vmatpush1.msra.mxu0 0.0
  %1733 = vmatprep.subr.mxu0 0.0
  %1734 = vmatpush1.msra.mxu0 0.0
  %1735 = vmatprep.subr.mxu0 0.0
  %1736 = vmatpush1.msra.mxu0 0.0
  %1737 = vmatprep.subr.mxu0 0.0
  %1738 = vmatpush1.msra.mxu0 0.0
  %1739 = vmatprep.subr.mxu0 0.0
  %1740 = vmatpush1.msra.mxu0 0.0
  %1741 = vmatprep.subr.mxu0 0.0
  %1742 = vmatpush1.msra.mxu0 0.0
  %1743 = vmatprep.subr.mxu0 0.0
  %1744 = vmatpush1.msra.mxu0 0.0
  %1745 = vmatprep.subr.mxu0 0.0
  %1746 = vmatpush1.msra.mxu0 0.0
  %1747 = vmatprep.subr.mxu0 0.0
  %1748 = vmatpush1.msra.mxu0 0.0
  %1749 = vmatprep.subr.mxu0 0.0
  %1750 = vmatpush1.msra.mxu0 0.0
  %1751 = vmatprep.subr.mxu0 0.0
  %1752 = vmatpush1.msra.mxu0 0.0
  %1753 = vmatprep.subr.mxu0 0.0
  %1754 = vmatpush1.msra.mxu0 0.0
  %1755 = vmatprep.subr.mxu0 0.0
  %1756 = vmatpush1.msra.mxu0 0.0
  %1757 = vmatprep.subr.mxu0 0.0
  %1758 = vmatpush1.msra.mxu0 0.0
  %1759 = vmatprep.subr.mxu0 0.0
  %1760 = vmatpush1.msra.mxu0 0.0
  %1761 = vmatprep.subr.mxu0 0.0
  %1762 = vmatpush1.msra.mxu0 0.0
  %1763 = vmatprep.subr.mxu0 0.0
  %1764 = vmatpush1.msra.mxu0 0.0
  %1765 = vmatprep.subr.mxu0 0.0
  %1766 = vmatpush1.msra.mxu0 0.0
  %1767 = vmatprep.subr.mxu0 0.0
  %1768 = vmatpush1.msra.mxu0 0.0
  %1769 = vmatprep.subr.mxu0 0.0
  %1770 = vmatpush1.msra.mxu0 0.0
  %1771 = vmatprep.subr.mxu0 0.0
  %1772 = vmatpush1.msra.mxu0 0.0
  %1773 = vmatprep.subr.mxu0 0.0
  %1774 = vmatpush1.msra.mxu0 0.0
  %1775 = vmatprep.subr.mxu0 0.0
  %1776 = vmatpush1.msra.mxu0 0.0
  %1777 = vmatprep.mubr.f32.mxu0 0.0
  %1778 = vmatmul.mubr.f32.gmra.mrb[0].mxu0 %v1699
  %v1779 = vpop.f32.mrb[0].mxu0
  %v1780 = vadd.f32 %v1697, %v1779
  %v1781 = vpop.f32.mrb[0].mxu0
  %1782 = vmatprep.mubr.f32.mxu0 0.0
  %1783 = vmatmul.mubr.f32.gmra.mrb[0].mxu0 %v1702
  %v1784 = vpop.f32.mrb[0].mxu0
  %v1785 = vadd.f32 %v1697, %v1784
  %v1786 = vpop.f32.mrb[0].mxu0
  %1787 = vmatprep.mubr.f32.mxu0 0.0
  %1788 = vmatmul.mubr.f32.gmra.mrb[0].mxu0 %v1705
  %v1789 = vpop.f32.mrb[0].mxu0
  %v1790 = vadd.f32 %v1697, %v1789
  %v1791 = vpop.f32.mrb[0].mxu0
  %1792 = vmatprep.mubr.f32.mxu0 0.0
  %1793 = vmatmul.mubr.f32.gmra.mrb[0].mxu0 %v1708
  %v1794 = vpop.f32.mrb[0].mxu0
  %v1795 = vadd.f32 %v1697, %v1794
  %v1796 = vpop.f32.mrb[0].mxu0
  %1797 = vdwg.mxu0
  %1798 = vst [vmem:[%s2] sm:$0xff] %v1780
  %1799 = vst [vmem:[%s2 + $0x8] sm:$0xff] %v1785
  %1800 = vst [vmem:[%s2 + $0x10] sm:$0xff] %v1790
  %1801 = vst [vmem:[%s2 + $0x18] sm:$0xff] %v1795
  // Predicated region
  $region10: #{wavenet_pallas.1} parent=0 // pred_check
    _
  $region11: #{wavenet_pallas.1} parent=0 // pred_check_branch
    %1803 = sbr.rel (0) target = $region13
  $region12: #{wavenet_pallas.1} parent=0 // pred_region
    _
  $region13: #{wavenet_pallas.1} parent=0 // pred_fallthru
    _
  // Predicated region
  $region14: #{wavenet_pallas.1} parent=0 // pred_check
    _
  $region15: #{wavenet_pallas.1} parent=0 // pred_check_branch
    %1805 = sbr.rel (0) target = $region17
  $region16: #{wavenet_pallas.1} parent=0 // pred_region
    _
  $region17: #{wavenet_pallas.1} parent=0 // pred_fallthru
    _

</llo_original>
